<compile_context>
chip_gen: v5e
topology: v5e:2x2
jax: 0.10.0
libtpu: 0.0.40
codegen_flags: <defaults>
</compile_context>

<pallas_src>
import jax
import jax.numpy as jnp
from jax.experimental import pallas as pl
from jax.experimental.pallas import tpu as pltpu

STATE_SIZE = 4096
ACTION_SIZE = 2
H1 = 128
H2 = 256
OUT_PAD = 128  # pad action dim (2) up to one full lane group for a dense store


def actor_kernel(x_ref, w1_ref, b1_ref, w2_ref, b2_ref, w3_ref, b3_ref, o_ref):
    """Fused 3-layer MLP on a (TM, STATE_SIZE) tile of states.

    bf16 operands on the MXU, f32 accumulation, f32 biases / ReLU on the VPU.
    Same body serves the gridless single-row call (TM=1) and the batched
    grid call (TM=8): only the block shapes differ.
    """
    x = x_ref[...].astype(jnp.bfloat16)                               # (TM, 4096)
    h1 = jnp.dot(x, w1_ref[...], preferred_element_type=jnp.float32)
    h1 = jnp.maximum(h1 + b1_ref[...], 0.0)                           # (TM, 128) f32
    h2 = jnp.dot(h1.astype(jnp.bfloat16), w2_ref[...],
                 preferred_element_type=jnp.float32)
    h2 = jnp.maximum(h2 + b2_ref[...], 0.0)                           # (TM, 256) f32
    out = jnp.dot(h2.astype(jnp.bfloat16), w3_ref[...],
                  preferred_element_type=jnp.float32)
    o_ref[...] = out + b3_ref[...]                                    # (TM, 128) padded


def _cost_estimate(n_rows):
    flops = 2 * n_rows * (STATE_SIZE * H1 + H1 * H2 + H2 * ACTION_SIZE)
    bytes_accessed = (
        (STATE_SIZE * H1 + H1 * H2 + H2 * OUT_PAD) * 2   # bf16 weights (once)
        + n_rows * STATE_SIZE * 4                        # states (f32)
        + (H1 + H2 + OUT_PAD) * 4                        # biases (f32)
        + n_rows * OUT_PAD * 4                           # output (f32)
    )
    return pl.CostEstimate(flops=flops, transcendentals=0,
                           bytes_accessed=bytes_accessed)


def actor_forward(state, params):
    """Module-semantics forward: state (B, STATE_SIZE) f32 -> (mu, sigma) scalars.

    The PyTorch forward only consumes output[0]; slice to the single useful row
    before the kernel so the other B-1 rows are never DMA'd or computed.
    Gridless single invocation (per review: tiling here is pure overhead).
    """
    w1, b1, w2, b2, w3, b3 = params
    x0 = state[0:1, :]                                                # (1, 4096)

    out = pl.pallas_call(
        actor_kernel,
        out_shape=jax.ShapeDtypeStruct((1, OUT_PAD), jnp.float32),
        in_specs=[pl.BlockSpec(memory_space=pltpu.MemorySpace.VMEM)] * 7,
        out_specs=pl.BlockSpec(memory_space=pltpu.MemorySpace.VMEM),
        compiler_params=pltpu.CompilerParams(vmem_limit_bytes=8 << 20),
        cost_estimate=_cost_estimate(1),
    )(x0, w1, b1, w2, b2, w3, b3)

    row0 = out[0, :ACTION_SIZE]   # `output[0]` in the PyTorch forward
    return row0[0], row0[1]


def actor_forward_batched(states, params, tm=8):
    """Rollout helper: run N states through the same MLP in one pallas_call.

    Weights use a constant index_map -> DMA'd once, VMEM-resident across all
    grid steps; the batch axis is 'parallel' so v7x uses both TensorCores.
    Returns (N, ACTION_SIZE): column 0 = mu, column 1 = sigma, per state.
    """
    w1, b1, w2, b2, w3, b3 = params
    n = states.shape[0]
    n_pad = pl.cdiv(n, tm) * tm
    if n_pad != n:
        states = jnp.pad(states, ((0, n_pad - n), (0, 0)))

    out = pl.pallas_call(
        actor_kernel,
        out_shape=jax.ShapeDtypeStruct((n_pad, OUT_PAD), jnp.float32),
        grid=(n_pad // tm,),
        in_specs=[
            pl.BlockSpec((tm, STATE_SIZE), lambda i: (i, 0)),   # states tile
            pl.BlockSpec((STATE_SIZE, H1), lambda i: (0, 0)),   # w1 (resident)
            pl.BlockSpec((1, H1),          lambda i: (0, 0)),   # b1 (resident)
            pl.BlockSpec((H1, H2),         lambda i: (0, 0)),   # w2 (resident)
            pl.BlockSpec((1, H2),          lambda i: (0, 0)),   # b2 (resident)
            pl.BlockSpec((H2, OUT_PAD),    lambda i: (0, 0)),   # w3 (resident)
            pl.BlockSpec((1, OUT_PAD),     lambda i: (0, 0)),   # b3 (resident)
        ],
        out_specs=pl.BlockSpec((tm, OUT_PAD), lambda i: (i, 0)),
        compiler_params=pltpu.CompilerParams(
            dimension_semantics=("parallel",),
            vmem_limit_bytes=16 << 20),
        cost_estimate=_cost_estimate(n_pad),
    )(states, w1, b1, w2, b2, w3, b3)

    return out[:n, :ACTION_SIZE]


def init_params(key):
    """Deterministic synthetic parameters, stored as (in_features, out_features).
    Weights bf16, biases f32; layer-3 weight/bias lane-padded to OUT_PAD."""
    k1, k2, k3, k4, k5, k6 = jax.random.split(key, 6)

    def uniform_init(k, shape, fan_in):
        bound = 1.0 / jnp.sqrt(fan_in)
        return jax.random.uniform(k, shape, jnp.float32, -bound, bound)

    w1 = uniform_init(k1, (STATE_SIZE, H1), STATE_SIZE).astype(jnp.bfloat16)
    b1 = uniform_init(k2, (1, H1), STATE_SIZE)
    w2 = uniform_init(k3, (H1, H2), H1).astype(jnp.bfloat16)
    b2 = uniform_init(k4, (1, H2), H1)
    w3_small = uniform_init(k5, (H2, ACTION_SIZE), H2).astype(jnp.bfloat16)
    b3_small = uniform_init(k6, (1, ACTION_SIZE), H2)

    w3 = jnp.zeros((H2, OUT_PAD), jnp.bfloat16).at[:, :ACTION_SIZE].set(w3_small)
    b3 = jnp.zeros((1, OUT_PAD), jnp.float32).at[:, :ACTION_SIZE].set(b3_small)
    return (w1, b1, w2, b2, w3, b3)


def actor_reference_batched(states, params):
    """Pure-JAX reference mirroring the kernel math (bf16 operands, f32 accum)."""
    w1, b1, w2, b2, w3, b3 = params
    x = states.astype(jnp.bfloat16)
    h1 = jnp.maximum(
        jnp.dot(x, w1, preferred_element_type=jnp.float32) + b1, 0.0)
    h2 = jnp.maximum(
        jnp.dot(h1.astype(jnp.bfloat16), w2,
                preferred_element_type=jnp.float32) + b2, 0.0)
    out = (jnp.dot(h2.astype(jnp.bfloat16), w3,
                   preferred_element_type=jnp.float32) + b3)
    return out[:, :ACTION_SIZE]


def actor_reference(state, params):
    out0 = actor_reference_batched(state[0:1, :], params)[0]
    return out0[0], out0[1]


if __name__ == "__main__":
    key = jax.random.PRNGKey(0)
    kp, kx, kb = jax.random.split(key, 3)
    params = init_params(kp)

    # 1) Module-semantics single-state forward (only row 0 is consumed).
    B = 2
    state = jax.random.normal(kx, (B, STATE_SIZE), jnp.float32)
    mu, sigma = jax.jit(actor_forward)(state, params)
    jax.block_until_ready((mu, sigma))

    mu_ref, sigma_ref = actor_reference(state, params)
    assert jnp.allclose(mu, mu_ref, atol=1e-2, rtol=1e-2), (mu, mu_ref)
    assert jnp.allclose(sigma, sigma_ref, atol=1e-2, rtol=1e-2), (sigma, sigma_ref)

    # 2) Batched rollout path: weights DMA'd once, resident across grid steps.
    N = 16
    states = jax.random.normal(kb, (N, STATE_SIZE), jnp.float32)
    out_b = jax.jit(actor_forward_batched)(states, params)
    jax.block_until_ready(out_b)

    out_b_ref = actor_reference_batched(states, params)
    assert jnp.allclose(out_b, out_b_ref, atol=1e-2, rtol=1e-2)

    print("KERNEL_OK")
</pallas_src>

<mosaic_0001>
module attributes {stable_mosaic.version = 11 : i64} {
  func.func @actor_kernel(%arg0: memref<1x4096xf32, #tpu.memory_space<vmem>>, %arg1: memref<4096x128xbf16, #tpu.memory_space<vmem>>, %arg2: memref<1x128xf32, #tpu.memory_space<vmem>>, %arg3: memref<128x256xbf16, #tpu.memory_space<vmem>>, %arg4: memref<1x256xf32, #tpu.memory_space<vmem>>, %arg5: memref<256x128xbf16, #tpu.memory_space<vmem>>, %arg6: memref<1x128xf32, #tpu.memory_space<vmem>>, %arg7: memref<1x128xf32, #tpu.memory_space<vmem>>) attributes {dimension_semantics = [], scalar_prefetch = 0 : i64, scratch_operands = 0 : i64, tpu.core_type = #tpu.core_type<tc>} {
    %c0 = arith.constant 0 : index
    %c0_0 = arith.constant 0 : index
    %0 = vector.load %arg0[%c0, %c0_0] : memref<1x4096xf32, #tpu.memory_space<vmem>>, vector<1x4096xf32>
    %1 = arith.truncf %0 : vector<1x4096xf32> to vector<1x4096xbf16>
    %c0_1 = arith.constant 0 : index
    %c0_2 = arith.constant 0 : index
    %2 = vector.load %arg1[%c0_1, %c0_2] : memref<4096x128xbf16, #tpu.memory_space<vmem>>, vector<4096x128xbf16>
    %cst = arith.constant dense<0.000000e+00> : vector<1x128xf32>
    %3 = tpu.matmul %1, %2, %cst {dimension_numbers = #tpu.dot_dimension_numbers<[1], [0], [0], [1], [0, 0, 1, 1], [], []>} : vector<1x4096xbf16>, vector<4096x128xbf16>, vector<1x128xf32> -> vector<1x128xf32>
    %c0_3 = arith.constant 0 : index
    %c0_4 = arith.constant 0 : index
    %4 = vector.load %arg2[%c0_3, %c0_4] : memref<1x128xf32, #tpu.memory_space<vmem>>, vector<1x128xf32>
    %5 = arith.addf %3, %4 : vector<1x128xf32>
    %cst_5 = arith.constant 0.000000e+00 : f32
    %6 = vector.broadcast %cst_5 : f32 to vector<1x128xf32>
    %7 = arith.maximumf %5, %6 : vector<1x128xf32>
    %8 = arith.truncf %7 : vector<1x128xf32> to vector<1x128xbf16>
    %c0_6 = arith.constant 0 : index
    %c0_7 = arith.constant 0 : index
    %9 = vector.load %arg3[%c0_6, %c0_7] : memref<128x256xbf16, #tpu.memory_space<vmem>>, vector<128x256xbf16>
    %cst_8 = arith.constant dense<0.000000e+00> : vector<1x256xf32>
    %10 = tpu.matmul %8, %9, %cst_8 {dimension_numbers = #tpu.dot_dimension_numbers<[1], [0], [0], [1], [0, 0, 1, 1], [], []>} : vector<1x128xbf16>, vector<128x256xbf16>, vector<1x256xf32> -> vector<1x256xf32>
    %c0_9 = arith.constant 0 : index
    %c0_10 = arith.constant 0 : index
    %11 = vector.load %arg4[%c0_9, %c0_10] : memref<1x256xf32, #tpu.memory_space<vmem>>, vector<1x256xf32>
    %12 = arith.addf %10, %11 : vector<1x256xf32>
    %cst_11 = arith.constant 0.000000e+00 : f32
    %13 = vector.broadcast %cst_11 : f32 to vector<1x256xf32>
    %14 = arith.maximumf %12, %13 : vector<1x256xf32>
    %15 = arith.truncf %14 : vector<1x256xf32> to vector<1x256xbf16>
    %c0_12 = arith.constant 0 : index
    %c0_13 = arith.constant 0 : index
    %16 = vector.load %arg5[%c0_12, %c0_13] : memref<256x128xbf16, #tpu.memory_space<vmem>>, vector<256x128xbf16>
    %cst_14 = arith.constant dense<0.000000e+00> : vector<1x128xf32>
    %17 = tpu.matmul %15, %16, %cst_14 {dimension_numbers = #tpu.dot_dimension_numbers<[1], [0], [0], [1], [0, 0, 1, 1], [], []>} : vector<1x256xbf16>, vector<256x128xbf16>, vector<1x128xf32> -> vector<1x128xf32>
    %c0_15 = arith.constant 0 : index
    %c0_16 = arith.constant 0 : index
    %18 = vector.load %arg6[%c0_15, %c0_16] : memref<1x128xf32, #tpu.memory_space<vmem>>, vector<1x128xf32>
    %19 = arith.addf %17, %18 : vector<1x128xf32>
    %c0_17 = arith.constant 0 : index
    %c0_18 = arith.constant 0 : index
    %20 = vector.load %arg7[%c0_17, %c0_18] : memref<1x128xf32, #tpu.memory_space<vmem>>, vector<1x128xf32>
    tpu.vector_store %arg7[%c0_17, %c0_18], %19 {strides = array<i32>} : memref<1x128xf32, #tpu.memory_space<vmem>>, vector<1x128xf32>,
    return
  }
}

</mosaic_0001>

<llo_original>
// kernel: actor_forward.1
$region0: #{actor_forward.1}
  #allocation0 [shape = 'u32[]', space=smem, size = 0x4, offset = 0x4, fixed_abs, tag = 'smem constant byte address 0x4 - core index']
  #allocation1 [shape = 'u32[72,128]{1,0:T(1,128)}', space=vmem, size = 0x9000, scoped, tag = 'internal scratch']
  %s0 = inlined_call_operand.vmem [shape: f32[1,4096], index: 0, kind: input, shape index: {}]
  %s1 = inlined_call_operand.hbm [shape: bf16[4096,128], index: 1, kind: input, shape index: {}]
  %s2 = inlined_call_operand.vmem [shape: f32[1,128], index: 2, kind: input, shape index: {}]
  %s3 = inlined_call_operand.hbm [shape: bf16[128,256], index: 3, kind: input, shape index: {}]
  %s4 = inlined_call_operand.vmem [shape: f32[1,256], index: 4, kind: input, shape index: {}]
  %s5 = inlined_call_operand.hbm [shape: bf16[256,128], index: 5, kind: input, shape index: {}]
  %s6 = inlined_call_operand.vmem [shape: f32[1,128], index: 6, kind: input, shape index: {}]
  %s7 = inlined_call_operand.vmem [shape: f32[1,128], index: 7, kind: output, shape index: {}]
  %s8 = sld [smem:[#allocation0]]
  $region50: #{actor_forward.1} parent=0
    _
  %s10 = ssub.s32 1, %s8
  %s11 = scalar_select 0, %s10, %s8
  $region1: #{actor_forward.1} parent=0
    #allocation2 [shape = 'u8[1048576]{0}', space=vmem, size = 0x100000, scoped, tag = 'input window, operand 1, single buffered']
    #allocation3 [shape = 's32[1]{0}', space=sflag, size = 0x4, scoped, tag = 'scoped memory for actor_forward.1']
    #allocation4 [shape = 'u8[65536]{0}', space=vmem, size = 0x10000, scoped, tag = 'input window, operand 3, single buffered']
    #allocation5 [shape = 's32[1]{0}', space=sflag, size = 0x4, scoped, tag = 'scoped memory for actor_forward.1']
    #allocation6 [shape = 'u8[65536]{0}', space=vmem, size = 0x10000, scoped, tag = 'input window, operand 5, single buffered']
    %12 = vsyncpa [#allocation3], 0
    %13 = vsyncpa [#allocation5], 0
    // Predicated region
    $region2: #{actor_forward.1} parent=1 // pred_check
      _
    $region3: #{actor_forward.1} parent=1 // pred_check_branch
      %15 = sbr.rel (0) target = $region5
    $region4: #{actor_forward.1} parent=1 // pred_region
      _
    $region5: #{actor_forward.1} parent=1 // pred_fallthru
      _
    // Predicated region
    $region6: #{actor_forward.1} parent=1 // pred_check
      _
    $region7: #{actor_forward.1} parent=1 // pred_check_branch
      %17 = sbr.rel (0) target = $region9
    $region8: #{actor_forward.1} parent=1 // pred_region
      %19 = vsyncadd [#allocation3], 0
      %s20 = sshll.u32 %s1, 4
      %s21 = int_to_ptr.hbm [resolvable:$true] %s20
      %s22 = sshll.u32 [#allocation2], 4
      %s23 = int_to_ptr.vmem [resolvable:$true] %s22
      %28 = dma.hbm_to_vmem [thread:$0]  %s21, 32768, %s23, [#allocation3], 64, 64, 4
    $region9: #{actor_forward.1} parent=1 // pred_fallthru
      _
    // Predicated region
    $region10: #{actor_forward.1} parent=1 // pred_check
      _
    $region11: #{actor_forward.1} parent=1 // pred_check_branch
      %30 = sbr.rel (0) target = $region13
    $region12: #{actor_forward.1} parent=1 // pred_region
      _
    $region13: #{actor_forward.1} parent=1 // pred_fallthru
      _
    // Predicated region
    $region14: #{actor_forward.1} parent=1 // pred_check
      _
    $region15: #{actor_forward.1} parent=1 // pred_check_branch
      %32 = sbr.rel (0) target = $region17
    $region16: #{actor_forward.1} parent=1 // pred_region
      %34 = vsyncadd [#allocation5], 0
      %s35 = sshll.u32 %s3, 4
      %s36 = int_to_ptr.hbm [resolvable:$true] %s35
      %s37 = sshll.u32 [#allocation4], 4
      %s38 = int_to_ptr.vmem [resolvable:$true] %s37
      %43 = dma.hbm_to_vmem [thread:$0]  %s36, 2048, %s38, [#allocation5], 128, 128, 8
    $region17: #{actor_forward.1} parent=1 // pred_fallthru
      _
    // Predicated region
    $region18: #{actor_forward.1} parent=1 // pred_check
      _
    $region19: #{actor_forward.1} parent=1 // pred_check_branch
      %45 = sbr.rel (0) target = $region21
    $region20: #{actor_forward.1} parent=1 // pred_region
      _
    $region21: #{actor_forward.1} parent=1 // pred_fallthru
      _
    // Predicated region
    $region22: #{actor_forward.1} parent=1 // pred_check
      _
    $region23: #{actor_forward.1} parent=1 // pred_check_branch
      %47 = sbr.rel (0) target = $region25
    $region24: #{actor_forward.1} parent=1 // pred_region
      %49 = vsyncadd [#allocation5], 0
      %s50 = sshll.u32 %s5, 4
      %s51 = int_to_ptr.hbm [resolvable:$true] %s50
      %s52 = sshll.u32 [#allocation6], 4
      %s53 = int_to_ptr.vmem [resolvable:$true] %s52
      %58 = dma.hbm_to_vmem [thread:$0]  %s51, 2048, %s53, [#allocation5], 64, 64, 4
    $region25: #{actor_forward.1} parent=1 // pred_fallthru
      _
    // Predicated region
    $region26: #{actor_forward.1} parent=1 // pred_check
      _
    $region27: #{actor_forward.1} parent=1 // pred_check_branch
      %60 = sbr.rel (0) target = $region29
    $region28: #{actor_forward.1} parent=1 // pred_region
      _
    $region29: #{actor_forward.1} parent=1 // pred_fallthru
      _
    // Predicated region
    $region30: #{actor_forward.1} parent=1 // pred_check
      _
    $region31: #{actor_forward.1} parent=1 // pred_check_branch
      %62 = sbr.rel (0) target = $region33
    $region32: #{actor_forward.1} parent=1 // pred_region
      %64 = dma.done [#allocation3], 32768
    $region33: #{actor_forward.1} parent=1 // pred_fallthru
      _
    // Predicated region
    $region34: #{actor_forward.1} parent=1 // pred_check
      _
    $region35: #{actor_forward.1} parent=1 // pred_check_branch
      %66 = sbr.rel (0) target = $region37
    $region36: #{actor_forward.1} parent=1 // pred_region
      %68 = dma.done [#allocation5], 2048
    $region37: #{actor_forward.1} parent=1 // pred_fallthru
      _
    // Predicated region
    $region38: #{actor_forward.1} parent=1 // pred_check
      _
    $region39: #{actor_forward.1} parent=1 // pred_check_branch
      %70 = sbr.rel (0) target = $region41
    $region40: #{actor_forward.1} parent=1 // pred_region
      %72 = dma.done [#allocation5], 2048
    $region41: #{actor_forward.1} parent=1 // pred_fallthru
      _
    %v73 = vld [vmem:[%s0] sm:$0xff]
    %v74 = vld [vmem:[%s0 + $0x8] sm:$0xff]
    %v75 = vld [vmem:[%s0 + $0x10] sm:$0xff]
    %v76 = vld [vmem:[%s0 + $0x18] sm:$0xff]
    %v81 = vperm.slane %v73, 0
    %v82 = vperm.slane %v73, 1
    %v83 = vperm.slane %v73, 2
    %v84 = vperm.slane %v73, 3
    %v85 = vperm.slane %v73, 4
    %v86 = vperm.slane %v73, 5
    %v87 = vperm.slane %v73, 6
    %v88 = vperm.slane %v73, 7
    %v89 = vperm.slane %v74, 0
    %v90 = vperm.slane %v74, 1
    %v91 = vperm.slane %v74, 2
    %v92 = vperm.slane %v74, 3
    %v93 = vperm.slane %v74, 4
    %v94 = vperm.slane %v74, 5
    %v95 = vperm.slane %v74, 6
    %v96 = vperm.slane %v74, 7
    %v97 = vperm.slane %v75, 0
    %v98 = vperm.slane %v75, 1
    %v99 = vperm.slane %v75, 2
    %v100 = vperm.slane %v75, 3
    %v101 = vperm.slane %v75, 4
    %v102 = vperm.slane %v75, 5
    %v103 = vperm.slane %v75, 6
    %v104 = vperm.slane %v75, 7
    %v105 = vperm.slane %v76, 0
    %v106 = vperm.slane %v76, 1
    %v107 = vperm.slane %v76, 2
    %v108 = vperm.slane %v76, 3
    %v109 = vperm.slane %v76, 4
    %v110 = vperm.slane %v76, 5
    %v111 = vperm.slane %v76, 6
    %v112 = vperm.slane %v76, 7
    %v145 = vpack.c.bf16 %v81, %v81
    %v146 = vpack.c.bf16 %v82, %v82
    %v147 = vpack.c.bf16 %v83, %v83
    %v148 = vpack.c.bf16 %v84, %v84
    %v149 = vpack.c.bf16 %v85, %v85
    %v150 = vpack.c.bf16 %v86, %v86
    %v151 = vpack.c.bf16 %v87, %v87
    %v152 = vpack.c.bf16 %v88, %v88
    %v153 = vpack.c.bf16 %v89, %v89
    %v154 = vpack.c.bf16 %v90, %v90
    %v155 = vpack.c.bf16 %v91, %v91
    %v156 = vpack.c.bf16 %v92, %v92
    %v157 = vpack.c.bf16 %v93, %v93
    %v158 = vpack.c.bf16 %v94, %v94
    %v159 = vpack.c.bf16 %v95, %v95
    %v160 = vpack.c.bf16 %v96, %v96
    %v161 = vpack.c.bf16 %v97, %v97
    %v162 = vpack.c.bf16 %v98, %v98
    %v163 = vpack.c.bf16 %v99, %v99
    %v164 = vpack.c.bf16 %v100, %v100
    %v165 = vpack.c.bf16 %v101, %v101
    %v166 = vpack.c.bf16 %v102, %v102
    %v167 = vpack.c.bf16 %v103, %v103
    %v168 = vpack.c.bf16 %v104, %v104
    %v169 = vpack.c.bf16 %v105, %v105
    %v170 = vpack.c.bf16 %v106, %v106
    %v171 = vpack.c.bf16 %v107, %v107
    %v172 = vpack.c.bf16 %v108, %v108
    %v173 = vpack.c.bf16 %v109, %v109
    %v174 = vpack.c.bf16 %v110, %v110
    %v175 = vpack.c.bf16 %v111, %v111
    %v176 = vpack.c.bf16 %v112, %v112
    %v177 = vld [vmem:[#allocation2] sm:$0xf]
    %v178 = vld [vmem:[#allocation2 + $0x4] sm:$0xf]
    %v179 = vld [vmem:[#allocation2 + $0x8] sm:$0xf]
    %v180 = vld [vmem:[#allocation2 + $0xc] sm:$0xf]
    %v181 = vld [vmem:[#allocation2 + $0x10] sm:$0xf]
    %v182 = vld [vmem:[#allocation2 + $0x14] sm:$0xf]
    %v183 = vld [vmem:[#allocation2 + $0x18] sm:$0xf]
    %v184 = vld [vmem:[#allocation2 + $0x1c] sm:$0xf]
    %v185 = vld [vmem:[#allocation2 + $0x20] sm:$0xf]
    %v186 = vld [vmem:[#allocation2 + $0x24] sm:$0xf]
    %v187 = vld [vmem:[#allocation2 + $0x28] sm:$0xf]
    %v188 = vld [vmem:[#allocation2 + $0x2c] sm:$0xf]
    %v189 = vld [vmem:[#allocation2 + $0x30] sm:$0xf]
    %v190 = vld [vmem:[#allocation2 + $0x34] sm:$0xf]
    %v191 = vld [vmem:[#allocation2 + $0x38] sm:$0xf]
    %v192 = vld [vmem:[#allocation2 + $0x3c] sm:$0xf]
    %v193 = vld [vmem:[#allocation2 + $0x40] sm:$0xf]
    %v194 = vld [vmem:[#allocation2 + $0x44] sm:$0xf]
    %v195 = vld [vmem:[#allocation2 + $0x48] sm:$0xf]
    %v196 = vld [vmem:[#allocation2 + $0x4c] sm:$0xf]
    %v197 = vld [vmem:[#allocation2 + $0x50] sm:$0xf]
    %v198 = vld [vmem:[#allocation2 + $0x54] sm:$0xf]
    %v199 = vld [vmem:[#allocation2 + $0x58] sm:$0xf]
    %v200 = vld [vmem:[#allocation2 + $0x5c] sm:$0xf]
    %v201 = vld [vmem:[#allocation2 + $0x60] sm:$0xf]
    %v202 = vld [vmem:[#allocation2 + $0x64] sm:$0xf]
    %v203 = vld [vmem:[#allocation2 + $0x68] sm:$0xf]
    %v204 = vld [vmem:[#allocation2 + $0x6c] sm:$0xf]
    %v205 = vld [vmem:[#allocation2 + $0x70] sm:$0xf]
    %v206 = vld [vmem:[#allocation2 + $0x74] sm:$0xf]
    %v207 = vld [vmem:[#allocation2 + $0x78] sm:$0xf]
    %v208 = vld [vmem:[#allocation2 + $0x7c] sm:$0xf]
    %v209 = vld [vmem:[#allocation2 + $0x80] sm:$0xf]
    %v210 = vld [vmem:[#allocation2 + $0x84] sm:$0xf]
    %v211 = vld [vmem:[#allocation2 + $0x88] sm:$0xf]
    %v212 = vld [vmem:[#allocation2 + $0x8c] sm:$0xf]
    %v213 = vld [vmem:[#allocation2 + $0x90] sm:$0xf]
    %v214 = vld [vmem:[#allocation2 + $0x94] sm:$0xf]
    %v215 = vld [vmem:[#allocation2 + $0x98] sm:$0xf]
    %v216 = vld [vmem:[#allocation2 + $0x9c] sm:$0xf]
    %v217 = vld [vmem:[#allocation2 + $0xa0] sm:$0xf]
    %v218 = vld [vmem:[#allocation2 + $0xa4] sm:$0xf]
    %v219 = vld [vmem:[#allocation2 + $0xa8] sm:$0xf]
    %v220 = vld [vmem:[#allocation2 + $0xac] sm:$0xf]
    %v221 = vld [vmem:[#allocation2 + $0xb0] sm:$0xf]
    %v222 = vld [vmem:[#allocation2 + $0xb4] sm:$0xf]
    %v223 = vld [vmem:[#allocation2 + $0xb8] sm:$0xf]
    %v224 = vld [vmem:[#allocation2 + $0xbc] sm:$0xf]
    %v225 = vld [vmem:[#allocation2 + $0xc0] sm:$0xf]
    %v226 = vld [vmem:[#allocation2 + $0xc4] sm:$0xf]
    %v227 = vld [vmem:[#allocation2 + $0xc8] sm:$0xf]
    %v228 = vld [vmem:[#allocation2 + $0xcc] sm:$0xf]
    %v229 = vld [vmem:[#allocation2 + $0xd0] sm:$0xf]
    %v230 = vld [vmem:[#allocation2 + $0xd4] sm:$0xf]
    %v231 = vld [vmem:[#allocation2 + $0xd8] sm:$0xf]
    %v232 = vld [vmem:[#allocation2 + $0xdc] sm:$0xf]
    %v233 = vld [vmem:[#allocation2 + $0xe0] sm:$0xf]
    %v234 = vld [vmem:[#allocation2 + $0xe4] sm:$0xf]
    %v235 = vld [vmem:[#allocation2 + $0xe8] sm:$0xf]
    %v236 = vld [vmem:[#allocation2 + $0xec] sm:$0xf]
    %v237 = vld [vmem:[#allocation2 + $0xf0] sm:$0xf]
    %v238 = vld [vmem:[#allocation2 + $0xf4] sm:$0xf]
    %v239 = vld [vmem:[#allocation2 + $0xf8] sm:$0xf]
    %v240 = vld [vmem:[#allocation2 + $0xfc] sm:$0xf]
    %v241 = vld [vmem:[#allocation2 + $0x100] sm:$0xf]
    %v242 = vld [vmem:[#allocation2 + $0x104] sm:$0xf]
    %v243 = vld [vmem:[#allocation2 + $0x108] sm:$0xf]
    %v244 = vld [vmem:[#allocation2 + $0x10c] sm:$0xf]
    %v245 = vld [vmem:[#allocation2 + $0x110] sm:$0xf]
    %v246 = vld [vmem:[#allocation2 + $0x114] sm:$0xf]
    %v247 = vld [vmem:[#allocation2 + $0x118] sm:$0xf]
    %v248 = vld [vmem:[#allocation2 + $0x11c] sm:$0xf]
    %v249 = vld [vmem:[#allocation2 + $0x120] sm:$0xf]
    %v250 = vld [vmem:[#allocation2 + $0x124] sm:$0xf]
    %v251 = vld [vmem:[#allocation2 + $0x128] sm:$0xf]
    %v252 = vld [vmem:[#allocation2 + $0x12c] sm:$0xf]
    %v253 = vld [vmem:[#allocation2 + $0x130] sm:$0xf]
    %v254 = vld [vmem:[#allocation2 + $0x134] sm:$0xf]
    %v255 = vld [vmem:[#allocation2 + $0x138] sm:$0xf]
    %v256 = vld [vmem:[#allocation2 + $0x13c] sm:$0xf]
    %v257 = vld [vmem:[#allocation2 + $0x140] sm:$0xf]
    %v258 = vld [vmem:[#allocation2 + $0x144] sm:$0xf]
    %v259 = vld [vmem:[#allocation2 + $0x148] sm:$0xf]
    %v260 = vld [vmem:[#allocation2 + $0x14c] sm:$0xf]
    %v261 = vld [vmem:[#allocation2 + $0x150] sm:$0xf]
    %v262 = vld [vmem:[#allocation2 + $0x154] sm:$0xf]
    %v263 = vld [vmem:[#allocation2 + $0x158] sm:$0xf]
    %v264 = vld [vmem:[#allocation2 + $0x15c] sm:$0xf]
    %v265 = vld [vmem:[#allocation2 + $0x160] sm:$0xf]
    %v266 = vld [vmem:[#allocation2 + $0x164] sm:$0xf]
    %v267 = vld [vmem:[#allocation2 + $0x168] sm:$0xf]
    %v268 = vld [vmem:[#allocation2 + $0x16c] sm:$0xf]
    %v269 = vld [vmem:[#allocation2 + $0x170] sm:$0xf]
    %v270 = vld [vmem:[#allocation2 + $0x174] sm:$0xf]
    %v271 = vld [vmem:[#allocation2 + $0x178] sm:$0xf]
    %v272 = vld [vmem:[#allocation2 + $0x17c] sm:$0xf]
    %v273 = vld [vmem:[#allocation2 + $0x180] sm:$0xf]
    %v274 = vld [vmem:[#allocation2 + $0x184] sm:$0xf]
    %v275 = vld [vmem:[#allocation2 + $0x188] sm:$0xf]
    %v276 = vld [vmem:[#allocation2 + $0x18c] sm:$0xf]
    %v277 = vld [vmem:[#allocation2 + $0x190] sm:$0xf]
    %v278 = vld [vmem:[#allocation2 + $0x194] sm:$0xf]
    %v279 = vld [vmem:[#allocation2 + $0x198] sm:$0xf]
    %v280 = vld [vmem:[#allocation2 + $0x19c] sm:$0xf]
    %v281 = vld [vmem:[#allocation2 + $0x1a0] sm:$0xf]
    %v282 = vld [vmem:[#allocation2 + $0x1a4] sm:$0xf]
    %v283 = vld [vmem:[#allocation2 + $0x1a8] sm:$0xf]
    %v284 = vld [vmem:[#allocation2 + $0x1ac] sm:$0xf]
    %v285 = vld [vmem:[#allocation2 + $0x1b0] sm:$0xf]
    %v286 = vld [vmem:[#allocation2 + $0x1b4] sm:$0xf]
    %v287 = vld [vmem:[#allocation2 + $0x1b8] sm:$0xf]
    %v288 = vld [vmem:[#allocation2 + $0x1bc] sm:$0xf]
    %v289 = vld [vmem:[#allocation2 + $0x1c0] sm:$0xf]
    %v290 = vld [vmem:[#allocation2 + $0x1c4] sm:$0xf]
    %v291 = vld [vmem:[#allocation2 + $0x1c8] sm:$0xf]
    %v292 = vld [vmem:[#allocation2 + $0x1cc] sm:$0xf]
    %v293 = vld [vmem:[#allocation2 + $0x1d0] sm:$0xf]
    %v294 = vld [vmem:[#allocation2 + $0x1d4] sm:$0xf]
    %v295 = vld [vmem:[#allocation2 + $0x1d8] sm:$0xf]
    %v296 = vld [vmem:[#allocation2 + $0x1dc] sm:$0xf]
    %v297 = vld [vmem:[#allocation2 + $0x1e0] sm:$0xf]
    %v298 = vld [vmem:[#allocation2 + $0x1e4] sm:$0xf]
    %v299 = vld [vmem:[#allocation2 + $0x1e8] sm:$0xf]
    %v300 = vld [vmem:[#allocation2 + $0x1ec] sm:$0xf]
    %v301 = vld [vmem:[#allocation2 + $0x1f0] sm:$0xf]
    %v302 = vld [vmem:[#allocation2 + $0x1f4] sm:$0xf]
    %v303 = vld [vmem:[#allocation2 + $0x1f8] sm:$0xf]
    %v304 = vld [vmem:[#allocation2 + $0x1fc] sm:$0xf]
    %v305 = vld [vmem:[#allocation2 + $0x200] sm:$0xf]
    %v306 = vld [vmem:[#allocation2 + $0x204] sm:$0xf]
    %v307 = vld [vmem:[#allocation2 + $0x208] sm:$0xf]
    %v308 = vld [vmem:[#allocation2 + $0x20c] sm:$0xf]
    %v309 = vld [vmem:[#allocation2 + $0x210] sm:$0xf]
    %v310 = vld [vmem:[#allocation2 + $0x214] sm:$0xf]
    %v311 = vld [vmem:[#allocation2 + $0x218] sm:$0xf]
    %v312 = vld [vmem:[#allocation2 + $0x21c] sm:$0xf]
    %v313 = vld [vmem:[#allocation2 + $0x220] sm:$0xf]
    %v314 = vld [vmem:[#allocation2 + $0x224] sm:$0xf]
    %v315 = vld [vmem:[#allocation2 + $0x228] sm:$0xf]
    %v316 = vld [vmem:[#allocation2 + $0x22c] sm:$0xf]
    %v317 = vld [vmem:[#allocation2 + $0x230] sm:$0xf]
    %v318 = vld [vmem:[#allocation2 + $0x234] sm:$0xf]
    %v319 = vld [vmem:[#allocation2 + $0x238] sm:$0xf]
    %v320 = vld [vmem:[#allocation2 + $0x23c] sm:$0xf]
    %v321 = vld [vmem:[#allocation2 + $0x240] sm:$0xf]
    %v322 = vld [vmem:[#allocation2 + $0x244] sm:$0xf]
    %v323 = vld [vmem:[#allocation2 + $0x248] sm:$0xf]
    %v324 = vld [vmem:[#allocation2 + $0x24c] sm:$0xf]
    %v325 = vld [vmem:[#allocation2 + $0x250] sm:$0xf]
    %v326 = vld [vmem:[#allocation2 + $0x254] sm:$0xf]
    %v327 = vld [vmem:[#allocation2 + $0x258] sm:$0xf]
    %v328 = vld [vmem:[#allocation2 + $0x25c] sm:$0xf]
    %v329 = vld [vmem:[#allocation2 + $0x260] sm:$0xf]
    %v330 = vld [vmem:[#allocation2 + $0x264] sm:$0xf]
    %v331 = vld [vmem:[#allocation2 + $0x268] sm:$0xf]
    %v332 = vld [vmem:[#allocation2 + $0x26c] sm:$0xf]
    %v333 = vld [vmem:[#allocation2 + $0x270] sm:$0xf]
    %v334 = vld [vmem:[#allocation2 + $0x274] sm:$0xf]
    %v335 = vld [vmem:[#allocation2 + $0x278] sm:$0xf]
    %v336 = vld [vmem:[#allocation2 + $0x27c] sm:$0xf]
    %v337 = vld [vmem:[#allocation2 + $0x280] sm:$0xf]
    %v338 = vld [vmem:[#allocation2 + $0x284] sm:$0xf]
    %v339 = vld [vmem:[#allocation2 + $0x288] sm:$0xf]
    %v340 = vld [vmem:[#allocation2 + $0x28c] sm:$0xf]
    %v341 = vld [vmem:[#allocation2 + $0x290] sm:$0xf]
    %v342 = vld [vmem:[#allocation2 + $0x294] sm:$0xf]
    %v343 = vld [vmem:[#allocation2 + $0x298] sm:$0xf]
    %v344 = vld [vmem:[#allocation2 + $0x29c] sm:$0xf]
    %v345 = vld [vmem:[#allocation2 + $0x2a0] sm:$0xf]
    %v346 = vld [vmem:[#allocation2 + $0x2a4] sm:$0xf]
    %v347 = vld [vmem:[#allocation2 + $0x2a8] sm:$0xf]
    %v348 = vld [vmem:[#allocation2 + $0x2ac] sm:$0xf]
    %v349 = vld [vmem:[#allocation2 + $0x2b0] sm:$0xf]
    %v350 = vld [vmem:[#allocation2 + $0x2b4] sm:$0xf]
    %v351 = vld [vmem:[#allocation2 + $0x2b8] sm:$0xf]
    %v352 = vld [vmem:[#allocation2 + $0x2bc] sm:$0xf]
    %v353 = vld [vmem:[#allocation2 + $0x2c0] sm:$0xf]
    %v354 = vld [vmem:[#allocation2 + $0x2c4] sm:$0xf]
    %v355 = vld [vmem:[#allocation2 + $0x2c8] sm:$0xf]
    %v356 = vld [vmem:[#allocation2 + $0x2cc] sm:$0xf]
    %v357 = vld [vmem:[#allocation2 + $0x2d0] sm:$0xf]
    %v358 = vld [vmem:[#allocation2 + $0x2d4] sm:$0xf]
    %v359 = vld [vmem:[#allocation2 + $0x2d8] sm:$0xf]
    %v360 = vld [vmem:[#allocation2 + $0x2dc] sm:$0xf]
    %v361 = vld [vmem:[#allocation2 + $0x2e0] sm:$0xf]
    %v362 = vld [vmem:[#allocation2 + $0x2e4] sm:$0xf]
    %v363 = vld [vmem:[#allocation2 + $0x2e8] sm:$0xf]
    %v364 = vld [vmem:[#allocation2 + $0x2ec] sm:$0xf]
    %v365 = vld [vmem:[#allocation2 + $0x2f0] sm:$0xf]
    %v366 = vld [vmem:[#allocation2 + $0x2f4] sm:$0xf]
    %v367 = vld [vmem:[#allocation2 + $0x2f8] sm:$0xf]
    %v368 = vld [vmem:[#allocation2 + $0x2fc] sm:$0xf]
    %v369 = vld [vmem:[#allocation2 + $0x300] sm:$0xf]
    %v370 = vld [vmem:[#allocation2 + $0x304] sm:$0xf]
    %v371 = vld [vmem:[#allocation2 + $0x308] sm:$0xf]
    %v372 = vld [vmem:[#allocation2 + $0x30c] sm:$0xf]
    %v373 = vld [vmem:[#allocation2 + $0x310] sm:$0xf]
    %v374 = vld [vmem:[#allocation2 + $0x314] sm:$0xf]
    %v375 = vld [vmem:[#allocation2 + $0x318] sm:$0xf]
    %v376 = vld [vmem:[#allocation2 + $0x31c] sm:$0xf]
    %v377 = vld [vmem:[#allocation2 + $0x320] sm:$0xf]
    %v378 = vld [vmem:[#allocation2 + $0x324] sm:$0xf]
    %v379 = vld [vmem:[#allocation2 + $0x328] sm:$0xf]
    %v380 = vld [vmem:[#allocation2 + $0x32c] sm:$0xf]
    %v381 = vld [vmem:[#allocation2 + $0x330] sm:$0xf]
    %v382 = vld [vmem:[#allocation2 + $0x334] sm:$0xf]
    %v383 = vld [vmem:[#allocation2 + $0x338] sm:$0xf]
    %v384 = vld [vmem:[#allocation2 + $0x33c] sm:$0xf]
    %v385 = vld [vmem:[#allocation2 + $0x340] sm:$0xf]
    %v386 = vld [vmem:[#allocation2 + $0x344] sm:$0xf]
    %v387 = vld [vmem:[#allocation2 + $0x348] sm:$0xf]
    %v388 = vld [vmem:[#allocation2 + $0x34c] sm:$0xf]
    %v389 = vld [vmem:[#allocation2 + $0x350] sm:$0xf]
    %v390 = vld [vmem:[#allocation2 + $0x354] sm:$0xf]
    %v391 = vld [vmem:[#allocation2 + $0x358] sm:$0xf]
    %v392 = vld [vmem:[#allocation2 + $0x35c] sm:$0xf]
    %v393 = vld [vmem:[#allocation2 + $0x360] sm:$0xf]
    %v394 = vld [vmem:[#allocation2 + $0x364] sm:$0xf]
    %v395 = vld [vmem:[#allocation2 + $0x368] sm:$0xf]
    %v396 = vld [vmem:[#allocation2 + $0x36c] sm:$0xf]
    %v397 = vld [vmem:[#allocation2 + $0x370] sm:$0xf]
    %v398 = vld [vmem:[#allocation2 + $0x374] sm:$0xf]
    %v399 = vld [vmem:[#allocation2 + $0x378] sm:$0xf]
    %v400 = vld [vmem:[#allocation2 + $0x37c] sm:$0xf]
    %v401 = vld [vmem:[#allocation2 + $0x380] sm:$0xf]
    %v402 = vld [vmem:[#allocation2 + $0x384] sm:$0xf]
    %v403 = vld [vmem:[#allocation2 + $0x388] sm:$0xf]
    %v404 = vld [vmem:[#allocation2 + $0x38c] sm:$0xf]
    %v405 = vld [vmem:[#allocation2 + $0x390] sm:$0xf]
    %v406 = vld [vmem:[#allocation2 + $0x394] sm:$0xf]
    %v407 = vld [vmem:[#allocation2 + $0x398] sm:$0xf]
    %v408 = vld [vmem:[#allocation2 + $0x39c] sm:$0xf]
    %v409 = vld [vmem:[#allocation2 + $0x3a0] sm:$0xf]
    %v410 = vld [vmem:[#allocation2 + $0x3a4] sm:$0xf]
    %v411 = vld [vmem:[#allocation2 + $0x3a8] sm:$0xf]
    %v412 = vld [vmem:[#allocation2 + $0x3ac] sm:$0xf]
    %v413 = vld [vmem:[#allocation2 + $0x3b0] sm:$0xf]
    %v414 = vld [vmem:[#allocation2 + $0x3b4] sm:$0xf]
    %v415 = vld [vmem:[#allocation2 + $0x3b8] sm:$0xf]
    %v416 = vld [vmem:[#allocation2 + $0x3bc] sm:$0xf]
    %v417 = vld [vmem:[#allocation2 + $0x3c0] sm:$0xf]
    %v418 = vld [vmem:[#allocation2 + $0x3c4] sm:$0xf]
    %v419 = vld [vmem:[#allocation2 + $0x3c8] sm:$0xf]
    %v420 = vld [vmem:[#allocation2 + $0x3cc] sm:$0xf]
    %v421 = vld [vmem:[#allocation2 + $0x3d0] sm:$0xf]
    %v422 = vld [vmem:[#allocation2 + $0x3d4] sm:$0xf]
    %v423 = vld [vmem:[#allocation2 + $0x3d8] sm:$0xf]
    %v424 = vld [vmem:[#allocation2 + $0x3dc] sm:$0xf]
    %v425 = vld [vmem:[#allocation2 + $0x3e0] sm:$0xf]
    %v426 = vld [vmem:[#allocation2 + $0x3e4] sm:$0xf]
    %v427 = vld [vmem:[#allocation2 + $0x3e8] sm:$0xf]
    %v428 = vld [vmem:[#allocation2 + $0x3ec] sm:$0xf]
    %v429 = vld [vmem:[#allocation2 + $0x3f0] sm:$0xf]
    %v430 = vld [vmem:[#allocation2 + $0x3f4] sm:$0xf]
    %v431 = vld [vmem:[#allocation2 + $0x3f8] sm:$0xf]
    %v432 = vld [vmem:[#allocation2 + $0x3fc] sm:$0xf]
    %v433 = vld [vmem:[#allocation2 + $0x400] sm:$0xf]
    %v434 = vld [vmem:[#allocation2 + $0x404] sm:$0xf]
    %v435 = vld [vmem:[#allocation2 + $0x408] sm:$0xf]
    %v436 = vld [vmem:[#allocation2 + $0x40c] sm:$0xf]
    %v437 = vld [vmem:[#allocation2 + $0x410] sm:$0xf]
    %v438 = vld [vmem:[#allocation2 + $0x414] sm:$0xf]
    %v439 = vld [vmem:[#allocation2 + $0x418] sm:$0xf]
    %v440 = vld [vmem:[#allocation2 + $0x41c] sm:$0xf]
    %v441 = vld [vmem:[#allocation2 + $0x420] sm:$0xf]
    %v442 = vld [vmem:[#allocation2 + $0x424] sm:$0xf]
    %v443 = vld [vmem:[#allocation2 + $0x428] sm:$0xf]
    %v444 = vld [vmem:[#allocation2 + $0x42c] sm:$0xf]
    %v445 = vld [vmem:[#allocation2 + $0x430] sm:$0xf]
    %v446 = vld [vmem:[#allocation2 + $0x434] sm:$0xf]
    %v447 = vld [vmem:[#allocation2 + $0x438] sm:$0xf]
    %v448 = vld [vmem:[#allocation2 + $0x43c] sm:$0xf]
    %v449 = vld [vmem:[#allocation2 + $0x440] sm:$0xf]
    %v450 = vld [vmem:[#allocation2 + $0x444] sm:$0xf]
    %v451 = vld [vmem:[#allocation2 + $0x448] sm:$0xf]
    %v452 = vld [vmem:[#allocation2 + $0x44c] sm:$0xf]
    %v453 = vld [vmem:[#allocation2 + $0x450] sm:$0xf]
    %v454 = vld [vmem:[#allocation2 + $0x454] sm:$0xf]
    %v455 = vld [vmem:[#allocation2 + $0x458] sm:$0xf]
    %v456 = vld [vmem:[#allocation2 + $0x45c] sm:$0xf]
    %v457 = vld [vmem:[#allocation2 + $0x460] sm:$0xf]
    %v458 = vld [vmem:[#allocation2 + $0x464] sm:$0xf]
    %v459 = vld [vmem:[#allocation2 + $0x468] sm:$0xf]
    %v460 = vld [vmem:[#allocation2 + $0x46c] sm:$0xf]
    %v461 = vld [vmem:[#allocation2 + $0x470] sm:$0xf]
    %v462 = vld [vmem:[#allocation2 + $0x474] sm:$0xf]
    %v463 = vld [vmem:[#allocation2 + $0x478] sm:$0xf]
    %v464 = vld [vmem:[#allocation2 + $0x47c] sm:$0xf]
    %v465 = vld [vmem:[#allocation2 + $0x480] sm:$0xf]
    %v466 = vld [vmem:[#allocation2 + $0x484] sm:$0xf]
    %v467 = vld [vmem:[#allocation2 + $0x488] sm:$0xf]
    %v468 = vld [vmem:[#allocation2 + $0x48c] sm:$0xf]
    %v469 = vld [vmem:[#allocation2 + $0x490] sm:$0xf]
    %v470 = vld [vmem:[#allocation2 + $0x494] sm:$0xf]
    %v471 = vld [vmem:[#allocation2 + $0x498] sm:$0xf]
    %v472 = vld [vmem:[#allocation2 + $0x49c] sm:$0xf]
    %v473 = vld [vmem:[#allocation2 + $0x4a0] sm:$0xf]
    %v474 = vld [vmem:[#allocation2 + $0x4a4] sm:$0xf]
    %v475 = vld [vmem:[#allocation2 + $0x4a8] sm:$0xf]
    %v476 = vld [vmem:[#allocation2 + $0x4ac] sm:$0xf]
    %v477 = vld [vmem:[#allocation2 + $0x4b0] sm:$0xf]
    %v478 = vld [vmem:[#allocation2 + $0x4b4] sm:$0xf]
    %v479 = vld [vmem:[#allocation2 + $0x4b8] sm:$0xf]
    %v480 = vld [vmem:[#allocation2 + $0x4bc] sm:$0xf]
    %v481 = vld [vmem:[#allocation2 + $0x4c0] sm:$0xf]
    %v482 = vld [vmem:[#allocation2 + $0x4c4] sm:$0xf]
    %v483 = vld [vmem:[#allocation2 + $0x4c8] sm:$0xf]
    %v484 = vld [vmem:[#allocation2 + $0x4cc] sm:$0xf]
    %v485 = vld [vmem:[#allocation2 + $0x4d0] sm:$0xf]
    %v486 = vld [vmem:[#allocation2 + $0x4d4] sm:$0xf]
    %v487 = vld [vmem:[#allocation2 + $0x4d8] sm:$0xf]
    %v488 = vld [vmem:[#allocation2 + $0x4dc] sm:$0xf]
    %v489 = vld [vmem:[#allocation2 + $0x4e0] sm:$0xf]
    %v490 = vld [vmem:[#allocation2 + $0x4e4] sm:$0xf]
    %v491 = vld [vmem:[#allocation2 + $0x4e8] sm:$0xf]
    %v492 = vld [vmem:[#allocation2 + $0x4ec] sm:$0xf]
    %v493 = vld [vmem:[#allocation2 + $0x4f0] sm:$0xf]
    %v494 = vld [vmem:[#allocation2 + $0x4f4] sm:$0xf]
    %v495 = vld [vmem:[#allocation2 + $0x4f8] sm:$0xf]
    %v496 = vld [vmem:[#allocation2 + $0x4fc] sm:$0xf]
    %v497 = vld [vmem:[#allocation2 + $0x500] sm:$0xf]
    %v498 = vld [vmem:[#allocation2 + $0x504] sm:$0xf]
    %v499 = vld [vmem:[#allocation2 + $0x508] sm:$0xf]
    %v500 = vld [vmem:[#allocation2 + $0x50c] sm:$0xf]
    %v501 = vld [vmem:[#allocation2 + $0x510] sm:$0xf]
    %v502 = vld [vmem:[#allocation2 + $0x514] sm:$0xf]
    %v503 = vld [vmem:[#allocation2 + $0x518] sm:$0xf]
    %v504 = vld [vmem:[#allocation2 + $0x51c] sm:$0xf]
    %v505 = vld [vmem:[#allocation2 + $0x520] sm:$0xf]
    %v506 = vld [vmem:[#allocation2 + $0x524] sm:$0xf]
    %v507 = vld [vmem:[#allocation2 + $0x528] sm:$0xf]
    %v508 = vld [vmem:[#allocation2 + $0x52c] sm:$0xf]
    %v509 = vld [vmem:[#allocation2 + $0x530] sm:$0xf]
    %v510 = vld [vmem:[#allocation2 + $0x534] sm:$0xf]
    %v511 = vld [vmem:[#allocation2 + $0x538] sm:$0xf]
    %v512 = vld [vmem:[#allocation2 + $0x53c] sm:$0xf]
    %v513 = vld [vmem:[#allocation2 + $0x540] sm:$0xf]
    %v514 = vld [vmem:[#allocation2 + $0x544] sm:$0xf]
    %v515 = vld [vmem:[#allocation2 + $0x548] sm:$0xf]
    %v516 = vld [vmem:[#allocation2 + $0x54c] sm:$0xf]
    %v517 = vld [vmem:[#allocation2 + $0x550] sm:$0xf]
    %v518 = vld [vmem:[#allocation2 + $0x554] sm:$0xf]
    %v519 = vld [vmem:[#allocation2 + $0x558] sm:$0xf]
    %v520 = vld [vmem:[#allocation2 + $0x55c] sm:$0xf]
    %v521 = vld [vmem:[#allocation2 + $0x560] sm:$0xf]
    %v522 = vld [vmem:[#allocation2 + $0x564] sm:$0xf]
    %v523 = vld [vmem:[#allocation2 + $0x568] sm:$0xf]
    %v524 = vld [vmem:[#allocation2 + $0x56c] sm:$0xf]
    %v525 = vld [vmem:[#allocation2 + $0x570] sm:$0xf]
    %v526 = vld [vmem:[#allocation2 + $0x574] sm:$0xf]
    %v527 = vld [vmem:[#allocation2 + $0x578] sm:$0xf]
    %v528 = vld [vmem:[#allocation2 + $0x57c] sm:$0xf]
    %v529 = vld [vmem:[#allocation2 + $0x580] sm:$0xf]
    %v530 = vld [vmem:[#allocation2 + $0x584] sm:$0xf]
    %v531 = vld [vmem:[#allocation2 + $0x588] sm:$0xf]
    %v532 = vld [vmem:[#allocation2 + $0x58c] sm:$0xf]
    %v533 = vld [vmem:[#allocation2 + $0x590] sm:$0xf]
    %v534 = vld [vmem:[#allocation2 + $0x594] sm:$0xf]
    %v535 = vld [vmem:[#allocation2 + $0x598] sm:$0xf]
    %v536 = vld [vmem:[#allocation2 + $0x59c] sm:$0xf]
    %v537 = vld [vmem:[#allocation2 + $0x5a0] sm:$0xf]
    %v538 = vld [vmem:[#allocation2 + $0x5a4] sm:$0xf]
    %v539 = vld [vmem:[#allocation2 + $0x5a8] sm:$0xf]
    %v540 = vld [vmem:[#allocation2 + $0x5ac] sm:$0xf]
    %v541 = vld [vmem:[#allocation2 + $0x5b0] sm:$0xf]
    %v542 = vld [vmem:[#allocation2 + $0x5b4] sm:$0xf]
    %v543 = vld [vmem:[#allocation2 + $0x5b8] sm:$0xf]
    %v544 = vld [vmem:[#allocation2 + $0x5bc] sm:$0xf]
    %v545 = vld [vmem:[#allocation2 + $0x5c0] sm:$0xf]
    %v546 = vld [vmem:[#allocation2 + $0x5c4] sm:$0xf]
    %v547 = vld [vmem:[#allocation2 + $0x5c8] sm:$0xf]
    %v548 = vld [vmem:[#allocation2 + $0x5cc] sm:$0xf]
    %v549 = vld [vmem:[#allocation2 + $0x5d0] sm:$0xf]
    %v550 = vld [vmem:[#allocation2 + $0x5d4] sm:$0xf]
    %v551 = vld [vmem:[#allocation2 + $0x5d8] sm:$0xf]
    %v552 = vld [vmem:[#allocation2 + $0x5dc] sm:$0xf]
    %v553 = vld [vmem:[#allocation2 + $0x5e0] sm:$0xf]
    %v554 = vld [vmem:[#allocation2 + $0x5e4] sm:$0xf]
    %v555 = vld [vmem:[#allocation2 + $0x5e8] sm:$0xf]
    %v556 = vld [vmem:[#allocation2 + $0x5ec] sm:$0xf]
    %v557 = vld [vmem:[#allocation2 + $0x5f0] sm:$0xf]
    %v558 = vld [vmem:[#allocation2 + $0x5f4] sm:$0xf]
    %v559 = vld [vmem:[#allocation2 + $0x5f8] sm:$0xf]
    %v560 = vld [vmem:[#allocation2 + $0x5fc] sm:$0xf]
    %v561 = vld [vmem:[#allocation2 + $0x600] sm:$0xf]
    %v562 = vld [vmem:[#allocation2 + $0x604] sm:$0xf]
    %v563 = vld [vmem:[#allocation2 + $0x608] sm:$0xf]
    %v564 = vld [vmem:[#allocation2 + $0x60c] sm:$0xf]
    %v565 = vld [vmem:[#allocation2 + $0x610] sm:$0xf]
    %v566 = vld [vmem:[#allocation2 + $0x614] sm:$0xf]
    %v567 = vld [vmem:[#allocation2 + $0x618] sm:$0xf]
    %v568 = vld [vmem:[#allocation2 + $0x61c] sm:$0xf]
    %v569 = vld [vmem:[#allocation2 + $0x620] sm:$0xf]
    %v570 = vld [vmem:[#allocation2 + $0x624] sm:$0xf]
    %v571 = vld [vmem:[#allocation2 + $0x628] sm:$0xf]
    %v572 = vld [vmem:[#allocation2 + $0x62c] sm:$0xf]
    %v573 = vld [vmem:[#allocation2 + $0x630] sm:$0xf]
    %v574 = vld [vmem:[#allocation2 + $0x634] sm:$0xf]
    %v575 = vld [vmem:[#allocation2 + $0x638] sm:$0xf]
    %v576 = vld [vmem:[#allocation2 + $0x63c] sm:$0xf]
    %v577 = vld [vmem:[#allocation2 + $0x640] sm:$0xf]
    %v578 = vld [vmem:[#allocation2 + $0x644] sm:$0xf]
    %v579 = vld [vmem:[#allocation2 + $0x648] sm:$0xf]
    %v580 = vld [vmem:[#allocation2 + $0x64c] sm:$0xf]
    %v581 = vld [vmem:[#allocation2 + $0x650] sm:$0xf]
    %v582 = vld [vmem:[#allocation2 + $0x654] sm:$0xf]
    %v583 = vld [vmem:[#allocation2 + $0x658] sm:$0xf]
    %v584 = vld [vmem:[#allocation2 + $0x65c] sm:$0xf]
    %v585 = vld [vmem:[#allocation2 + $0x660] sm:$0xf]
    %v586 = vld [vmem:[#allocation2 + $0x664] sm:$0xf]
    %v587 = vld [vmem:[#allocation2 + $0x668] sm:$0xf]
    %v588 = vld [vmem:[#allocation2 + $0x66c] sm:$0xf]
    %v589 = vld [vmem:[#allocation2 + $0x670] sm:$0xf]
    %v590 = vld [vmem:[#allocation2 + $0x674] sm:$0xf]
    %v591 = vld [vmem:[#allocation2 + $0x678] sm:$0xf]
    %v592 = vld [vmem:[#allocation2 + $0x67c] sm:$0xf]
    %v593 = vld [vmem:[#allocation2 + $0x680] sm:$0xf]
    %v594 = vld [vmem:[#allocation2 + $0x684] sm:$0xf]
    %v595 = vld [vmem:[#allocation2 + $0x688] sm:$0xf]
    %v596 = vld [vmem:[#allocation2 + $0x68c] sm:$0xf]
    %v597 = vld [vmem:[#allocation2 + $0x690] sm:$0xf]
    %v598 = vld [vmem:[#allocation2 + $0x694] sm:$0xf]
    %v599 = vld [vmem:[#allocation2 + $0x698] sm:$0xf]
    %v600 = vld [vmem:[#allocation2 + $0x69c] sm:$0xf]
    %v601 = vld [vmem:[#allocation2 + $0x6a0] sm:$0xf]
    %v602 = vld [vmem:[#allocation2 + $0x6a4] sm:$0xf]
    %v603 = vld [vmem:[#allocation2 + $0x6a8] sm:$0xf]
    %v604 = vld [vmem:[#allocation2 + $0x6ac] sm:$0xf]
    %v605 = vld [vmem:[#allocation2 + $0x6b0] sm:$0xf]
    %v606 = vld [vmem:[#allocation2 + $0x6b4] sm:$0xf]
    %v607 = vld [vmem:[#allocation2 + $0x6b8] sm:$0xf]
    %v608 = vld [vmem:[#allocation2 + $0x6bc] sm:$0xf]
    %v609 = vld [vmem:[#allocation2 + $0x6c0] sm:$0xf]
    %v610 = vld [vmem:[#allocation2 + $0x6c4] sm:$0xf]
    %v611 = vld [vmem:[#allocation2 + $0x6c8] sm:$0xf]
    %v612 = vld [vmem:[#allocation2 + $0x6cc] sm:$0xf]
    %v613 = vld [vmem:[#allocation2 + $0x6d0] sm:$0xf]
    %v614 = vld [vmem:[#allocation2 + $0x6d4] sm:$0xf]
    %v615 = vld [vmem:[#allocation2 + $0x6d8] sm:$0xf]
    %v616 = vld [vmem:[#allocation2 + $0x6dc] sm:$0xf]
    %v617 = vld [vmem:[#allocation2 + $0x6e0] sm:$0xf]
    %v618 = vld [vmem:[#allocation2 + $0x6e4] sm:$0xf]
    %v619 = vld [vmem:[#allocation2 + $0x6e8] sm:$0xf]
    %v620 = vld [vmem:[#allocation2 + $0x6ec] sm:$0xf]
    %v621 = vld [vmem:[#allocation2 + $0x6f0] sm:$0xf]
    %v622 = vld [vmem:[#allocation2 + $0x6f4] sm:$0xf]
    %v623 = vld [vmem:[#allocation2 + $0x6f8] sm:$0xf]
    %v624 = vld [vmem:[#allocation2 + $0x6fc] sm:$0xf]
    %v625 = vld [vmem:[#allocation2 + $0x700] sm:$0xf]
    %v626 = vld [vmem:[#allocation2 + $0x704] sm:$0xf]
    %v627 = vld [vmem:[#allocation2 + $0x708] sm:$0xf]
    %v628 = vld [vmem:[#allocation2 + $0x70c] sm:$0xf]
    %v629 = vld [vmem:[#allocation2 + $0x710] sm:$0xf]
    %v630 = vld [vmem:[#allocation2 + $0x714] sm:$0xf]
    %v631 = vld [vmem:[#allocation2 + $0x718] sm:$0xf]
    %v632 = vld [vmem:[#allocation2 + $0x71c] sm:$0xf]
    %v633 = vld [vmem:[#allocation2 + $0x720] sm:$0xf]
    %v634 = vld [vmem:[#allocation2 + $0x724] sm:$0xf]
    %v635 = vld [vmem:[#allocation2 + $0x728] sm:$0xf]
    %v636 = vld [vmem:[#allocation2 + $0x72c] sm:$0xf]
    %v637 = vld [vmem:[#allocation2 + $0x730] sm:$0xf]
    %v638 = vld [vmem:[#allocation2 + $0x734] sm:$0xf]
    %v639 = vld [vmem:[#allocation2 + $0x738] sm:$0xf]
    %v640 = vld [vmem:[#allocation2 + $0x73c] sm:$0xf]
    %v641 = vld [vmem:[#allocation2 + $0x740] sm:$0xf]
    %v642 = vld [vmem:[#allocation2 + $0x744] sm:$0xf]
    %v643 = vld [vmem:[#allocation2 + $0x748] sm:$0xf]
    %v644 = vld [vmem:[#allocation2 + $0x74c] sm:$0xf]
    %v645 = vld [vmem:[#allocation2 + $0x750] sm:$0xf]
    %v646 = vld [vmem:[#allocation2 + $0x754] sm:$0xf]
    %v647 = vld [vmem:[#allocation2 + $0x758] sm:$0xf]
    %v648 = vld [vmem:[#allocation2 + $0x75c] sm:$0xf]
    %v649 = vld [vmem:[#allocation2 + $0x760] sm:$0xf]
    %v650 = vld [vmem:[#allocation2 + $0x764] sm:$0xf]
    %v651 = vld [vmem:[#allocation2 + $0x768] sm:$0xf]
    %v652 = vld [vmem:[#allocation2 + $0x76c] sm:$0xf]
    %v653 = vld [vmem:[#allocation2 + $0x770] sm:$0xf]
    %v654 = vld [vmem:[#allocation2 + $0x774] sm:$0xf]
    %v655 = vld [vmem:[#allocation2 + $0x778] sm:$0xf]
    %v656 = vld [vmem:[#allocation2 + $0x77c] sm:$0xf]
    %v657 = vld [vmem:[#allocation2 + $0x780] sm:$0xf]
    %v658 = vld [vmem:[#allocation2 + $0x784] sm:$0xf]
    %v659 = vld [vmem:[#allocation2 + $0x788] sm:$0xf]
    %v660 = vld [vmem:[#allocation2 + $0x78c] sm:$0xf]
    %v661 = vld [vmem:[#allocation2 + $0x790] sm:$0xf]
    %v662 = vld [vmem:[#allocation2 + $0x794] sm:$0xf]
    %v663 = vld [vmem:[#allocation2 + $0x798] sm:$0xf]
    %v664 = vld [vmem:[#allocation2 + $0x79c] sm:$0xf]
    %v665 = vld [vmem:[#allocation2 + $0x7a0] sm:$0xf]
    %v666 = vld [vmem:[#allocation2 + $0x7a4] sm:$0xf]
    %v667 = vld [vmem:[#allocation2 + $0x7a8] sm:$0xf]
    %v668 = vld [vmem:[#allocation2 + $0x7ac] sm:$0xf]
    %v669 = vld [vmem:[#allocation2 + $0x7b0] sm:$0xf]
    %v670 = vld [vmem:[#allocation2 + $0x7b4] sm:$0xf]
    %v671 = vld [vmem:[#allocation2 + $0x7b8] sm:$0xf]
    %v672 = vld [vmem:[#allocation2 + $0x7bc] sm:$0xf]
    %v673 = vld [vmem:[#allocation2 + $0x7c0] sm:$0xf]
    %v674 = vld [vmem:[#allocation2 + $0x7c4] sm:$0xf]
    %v675 = vld [vmem:[#allocation2 + $0x7c8] sm:$0xf]
    %v676 = vld [vmem:[#allocation2 + $0x7cc] sm:$0xf]
    %v677 = vld [vmem:[#allocation2 + $0x7d0] sm:$0xf]
    %v678 = vld [vmem:[#allocation2 + $0x7d4] sm:$0xf]
    %v679 = vld [vmem:[#allocation2 + $0x7d8] sm:$0xf]
    %v680 = vld [vmem:[#allocation2 + $0x7dc] sm:$0xf]
    %v681 = vld [vmem:[#allocation2 + $0x7e0] sm:$0xf]
    %v682 = vld [vmem:[#allocation2 + $0x7e4] sm:$0xf]
    %v683 = vld [vmem:[#allocation2 + $0x7e8] sm:$0xf]
    %v684 = vld [vmem:[#allocation2 + $0x7ec] sm:$0xf]
    %v685 = vld [vmem:[#allocation2 + $0x7f0] sm:$0xf]
    %v686 = vld [vmem:[#allocation2 + $0x7f4] sm:$0xf]
    %v687 = vld [vmem:[#allocation2 + $0x7f8] sm:$0xf]
    %v688 = vld [vmem:[#allocation2 + $0x7fc] sm:$0xf]
    %v689 = vld [vmem:[%s2] sm:$0x1]
    %v1202 = vunpack.c.l.b16 %v177
    %v1203 = vunpack.c.l.b16 %v178
    %v1204 = vunpack.c.l.b16 %v179
    %v1205 = vunpack.c.l.b16 %v180
    %v1206 = vunpack.c.l.b16 %v181
    %v1207 = vunpack.c.l.b16 %v182
    %v1208 = vunpack.c.l.b16 %v183
    %v1209 = vunpack.c.l.b16 %v184
    %v1210 = vunpack.c.l.b16 %v185
    %v1211 = vunpack.c.l.b16 %v186
    %v1212 = vunpack.c.l.b16 %v187
    %v1213 = vunpack.c.l.b16 %v188
    %v1214 = vunpack.c.l.b16 %v189
    %v1215 = vunpack.c.l.b16 %v190
    %v1216 = vunpack.c.l.b16 %v191
    %v1217 = vunpack.c.l.b16 %v192
    %v1218 = vunpack.c.l.b16 %v193
    %v1219 = vunpack.c.l.b16 %v194
    %v1220 = vunpack.c.l.b16 %v195
    %v1221 = vunpack.c.l.b16 %v196
    %v1222 = vunpack.c.l.b16 %v197
    %v1223 = vunpack.c.l.b16 %v198
    %v1224 = vunpack.c.l.b16 %v199
    %v1225 = vunpack.c.l.b16 %v200
    %v1226 = vunpack.c.l.b16 %v201
    %v1227 = vunpack.c.l.b16 %v202
    %v1228 = vunpack.c.l.b16 %v203
    %v1229 = vunpack.c.l.b16 %v204
    %v1230 = vunpack.c.l.b16 %v205
    %v1231 = vunpack.c.l.b16 %v206
    %v1232 = vunpack.c.l.b16 %v207
    %v1233 = vunpack.c.l.b16 %v208
    %v1234 = vunpack.c.l.b16 %v209
    %v1235 = vunpack.c.l.b16 %v210
    %v1236 = vunpack.c.l.b16 %v211
    %v1237 = vunpack.c.l.b16 %v212
    %v1238 = vunpack.c.l.b16 %v213
    %v1239 = vunpack.c.l.b16 %v214
    %v1240 = vunpack.c.l.b16 %v215
    %v1241 = vunpack.c.l.b16 %v216
    %v1242 = vunpack.c.l.b16 %v217
    %v1243 = vunpack.c.l.b16 %v218
    %v1244 = vunpack.c.l.b16 %v219
    %v1245 = vunpack.c.l.b16 %v220
    %v1246 = vunpack.c.l.b16 %v221
    %v1247 = vunpack.c.l.b16 %v222
    %v1248 = vunpack.c.l.b16 %v223
    %v1249 = vunpack.c.l.b16 %v224
    %v1250 = vunpack.c.l.b16 %v225
    %v1251 = vunpack.c.l.b16 %v226
    %v1252 = vunpack.c.l.b16 %v227
    %v1253 = vunpack.c.l.b16 %v228
    %v1254 = vunpack.c.l.b16 %v229
    %v1255 = vunpack.c.l.b16 %v230
    %v1256 = vunpack.c.l.b16 %v231
    %v1257 = vunpack.c.l.b16 %v232
    %v1258 = vunpack.c.l.b16 %v233
    %v1259 = vunpack.c.l.b16 %v234
    %v1260 = vunpack.c.l.b16 %v235
    %v1261 = vunpack.c.l.b16 %v236
    %v1262 = vunpack.c.l.b16 %v237
    %v1263 = vunpack.c.l.b16 %v238
    %v1264 = vunpack.c.l.b16 %v239
    %v1265 = vunpack.c.l.b16 %v240
    %v1266 = vunpack.c.l.b16 %v241
    %v1267 = vunpack.c.l.b16 %v242
    %v1268 = vunpack.c.l.b16 %v243
    %v1269 = vunpack.c.l.b16 %v244
    %v1270 = vunpack.c.l.b16 %v245
    %v1271 = vunpack.c.l.b16 %v246
    %v1272 = vunpack.c.l.b16 %v247
    %v1273 = vunpack.c.l.b16 %v248
    %v1274 = vunpack.c.l.b16 %v249
    %v1275 = vunpack.c.l.b16 %v250
    %v1276 = vunpack.c.l.b16 %v251
    %v1277 = vunpack.c.l.b16 %v252
    %v1278 = vunpack.c.l.b16 %v253
    %v1279 = vunpack.c.l.b16 %v254
    %v1280 = vunpack.c.l.b16 %v255
    %v1281 = vunpack.c.l.b16 %v256
    %v1282 = vunpack.c.l.b16 %v257
    %v1283 = vunpack.c.l.b16 %v258
    %v1284 = vunpack.c.l.b16 %v259
    %v1285 = vunpack.c.l.b16 %v260
    %v1286 = vunpack.c.l.b16 %v261
    %v1287 = vunpack.c.l.b16 %v262
    %v1288 = vunpack.c.l.b16 %v263
    %v1289 = vunpack.c.l.b16 %v264
    %v1290 = vunpack.c.l.b16 %v265
    %v1291 = vunpack.c.l.b16 %v266
    %v1292 = vunpack.c.l.b16 %v267
    %v1293 = vunpack.c.l.b16 %v268
    %v1294 = vunpack.c.l.b16 %v269
    %v1295 = vunpack.c.l.b16 %v270
    %v1296 = vunpack.c.l.b16 %v271
    %v1297 = vunpack.c.l.b16 %v272
    %v1298 = vunpack.c.l.b16 %v273
    %v1299 = vunpack.c.l.b16 %v274
    %v1300 = vunpack.c.l.b16 %v275
    %v1301 = vunpack.c.l.b16 %v276
    %v1302 = vunpack.c.l.b16 %v277
    %v1303 = vunpack.c.l.b16 %v278
    %v1304 = vunpack.c.l.b16 %v279
    %v1305 = vunpack.c.l.b16 %v280
    %v1306 = vunpack.c.l.b16 %v281
    %v1307 = vunpack.c.l.b16 %v282
    %v1308 = vunpack.c.l.b16 %v283
    %v1309 = vunpack.c.l.b16 %v284
    %v1310 = vunpack.c.l.b16 %v285
    %v1311 = vunpack.c.l.b16 %v286
    %v1312 = vunpack.c.l.b16 %v287
    %v1313 = vunpack.c.l.b16 %v288
    %v1314 = vunpack.c.l.b16 %v289
    %v1315 = vunpack.c.l.b16 %v290
    %v1316 = vunpack.c.l.b16 %v291
    %v1317 = vunpack.c.l.b16 %v292
    %v1318 = vunpack.c.l.b16 %v293
    %v1319 = vunpack.c.l.b16 %v294
    %v1320 = vunpack.c.l.b16 %v295
    %v1321 = vunpack.c.l.b16 %v296
    %v1322 = vunpack.c.l.b16 %v297
    %v1323 = vunpack.c.l.b16 %v298
    %v1324 = vunpack.c.l.b16 %v299
    %v1325 = vunpack.c.l.b16 %v300
    %v1326 = vunpack.c.l.b16 %v301
    %v1327 = vunpack.c.l.b16 %v302
    %v1328 = vunpack.c.l.b16 %v303
    %v1329 = vunpack.c.l.b16 %v304
    %v1330 = vunpack.c.l.b16 %v305
    %v1331 = vunpack.c.l.b16 %v306
    %v1332 = vunpack.c.l.b16 %v307
    %v1333 = vunpack.c.l.b16 %v308
    %v1334 = vunpack.c.l.b16 %v309
    %v1335 = vunpack.c.l.b16 %v310
    %v1336 = vunpack.c.l.b16 %v311
    %v1337 = vunpack.c.l.b16 %v312
    %v1338 = vunpack.c.l.b16 %v313
    %v1339 = vunpack.c.l.b16 %v314
    %v1340 = vunpack.c.l.b16 %v315
    %v1341 = vunpack.c.l.b16 %v316
    %v1342 = vunpack.c.l.b16 %v317
    %v1343 = vunpack.c.l.b16 %v318
    %v1344 = vunpack.c.l.b16 %v319
    %v1345 = vunpack.c.l.b16 %v320
    %v1346 = vunpack.c.l.b16 %v321
    %v1347 = vunpack.c.l.b16 %v322
    %v1348 = vunpack.c.l.b16 %v323
    %v1349 = vunpack.c.l.b16 %v324
    %v1350 = vunpack.c.l.b16 %v325
    %v1351 = vunpack.c.l.b16 %v326
    %v1352 = vunpack.c.l.b16 %v327
    %v1353 = vunpack.c.l.b16 %v328
    %v1354 = vunpack.c.l.b16 %v329
    %v1355 = vunpack.c.l.b16 %v330
    %v1356 = vunpack.c.l.b16 %v331
    %v1357 = vunpack.c.l.b16 %v332
    %v1358 = vunpack.c.l.b16 %v333
    %v1359 = vunpack.c.l.b16 %v334
    %v1360 = vunpack.c.l.b16 %v335
    %v1361 = vunpack.c.l.b16 %v336
    %v1362 = vunpack.c.l.b16 %v337
    %v1363 = vunpack.c.l.b16 %v338
    %v1364 = vunpack.c.l.b16 %v339
    %v1365 = vunpack.c.l.b16 %v340
    %v1366 = vunpack.c.l.b16 %v341
    %v1367 = vunpack.c.l.b16 %v342
    %v1368 = vunpack.c.l.b16 %v343
    %v1369 = vunpack.c.l.b16 %v344
    %v1370 = vunpack.c.l.b16 %v345
    %v1371 = vunpack.c.l.b16 %v346
    %v1372 = vunpack.c.l.b16 %v347
    %v1373 = vunpack.c.l.b16 %v348
    %v1374 = vunpack.c.l.b16 %v349
    %v1375 = vunpack.c.l.b16 %v350
    %v1376 = vunpack.c.l.b16 %v351
    %v1377 = vunpack.c.l.b16 %v352
    %v1378 = vunpack.c.l.b16 %v353
    %v1379 = vunpack.c.l.b16 %v354
    %v1380 = vunpack.c.l.b16 %v355
    %v1381 = vunpack.c.l.b16 %v356
    %v1382 = vunpack.c.l.b16 %v357
    %v1383 = vunpack.c.l.b16 %v358
    %v1384 = vunpack.c.l.b16 %v359
    %v1385 = vunpack.c.l.b16 %v360
    %v1386 = vunpack.c.l.b16 %v361
    %v1387 = vunpack.c.l.b16 %v362
    %v1388 = vunpack.c.l.b16 %v363
    %v1389 = vunpack.c.l.b16 %v364
    %v1390 = vunpack.c.l.b16 %v365
    %v1391 = vunpack.c.l.b16 %v366
    %v1392 = vunpack.c.l.b16 %v367
    %v1393 = vunpack.c.l.b16 %v368
    %v1394 = vunpack.c.l.b16 %v369
    %v1395 = vunpack.c.l.b16 %v370
    %v1396 = vunpack.c.l.b16 %v371
    %v1397 = vunpack.c.l.b16 %v372
    %v1398 = vunpack.c.l.b16 %v373
    %v1399 = vunpack.c.l.b16 %v374
    %v1400 = vunpack.c.l.b16 %v375
    %v1401 = vunpack.c.l.b16 %v376
    %v1402 = vunpack.c.l.b16 %v377
    %v1403 = vunpack.c.l.b16 %v378
    %v1404 = vunpack.c.l.b16 %v379
    %v1405 = vunpack.c.l.b16 %v380
    %v1406 = vunpack.c.l.b16 %v381
    %v1407 = vunpack.c.l.b16 %v382
    %v1408 = vunpack.c.l.b16 %v383
    %v1409 = vunpack.c.l.b16 %v384
    %v1410 = vunpack.c.l.b16 %v385
    %v1411 = vunpack.c.l.b16 %v386
    %v1412 = vunpack.c.l.b16 %v387
    %v1413 = vunpack.c.l.b16 %v388
    %v1414 = vunpack.c.l.b16 %v389
    %v1415 = vunpack.c.l.b16 %v390
    %v1416 = vunpack.c.l.b16 %v391
    %v1417 = vunpack.c.l.b16 %v392
    %v1418 = vunpack.c.l.b16 %v393
    %v1419 = vunpack.c.l.b16 %v394
    %v1420 = vunpack.c.l.b16 %v395
    %v1421 = vunpack.c.l.b16 %v396
    %v1422 = vunpack.c.l.b16 %v397
    %v1423 = vunpack.c.l.b16 %v398
    %v1424 = vunpack.c.l.b16 %v399
    %v1425 = vunpack.c.l.b16 %v400
    %v1426 = vunpack.c.l.b16 %v401
    %v1427 = vunpack.c.l.b16 %v402
    %v1428 = vunpack.c.l.b16 %v403
    %v1429 = vunpack.c.l.b16 %v404
    %v1430 = vunpack.c.l.b16 %v405
    %v1431 = vunpack.c.l.b16 %v406
    %v1432 = vunpack.c.l.b16 %v407
    %v1433 = vunpack.c.l.b16 %v408
    %v1434 = vunpack.c.l.b16 %v409
    %v1435 = vunpack.c.l.b16 %v410
    %v1436 = vunpack.c.l.b16 %v411
    %v1437 = vunpack.c.l.b16 %v412
    %v1438 = vunpack.c.l.b16 %v413
    %v1439 = vunpack.c.l.b16 %v414
    %v1440 = vunpack.c.l.b16 %v415
    %v1441 = vunpack.c.l.b16 %v416
    %v1442 = vunpack.c.l.b16 %v417
    %v1443 = vunpack.c.l.b16 %v418
    %v1444 = vunpack.c.l.b16 %v419
    %v1445 = vunpack.c.l.b16 %v420
    %v1446 = vunpack.c.l.b16 %v421
    %v1447 = vunpack.c.l.b16 %v422
    %v1448 = vunpack.c.l.b16 %v423
    %v1449 = vunpack.c.l.b16 %v424
    %v1450 = vunpack.c.l.b16 %v425
    %v1451 = vunpack.c.l.b16 %v426
    %v1452 = vunpack.c.l.b16 %v427
    %v1453 = vunpack.c.l.b16 %v428
    %v1454 = vunpack.c.l.b16 %v429
    %v1455 = vunpack.c.l.b16 %v430
    %v1456 = vunpack.c.l.b16 %v431
    %v1457 = vunpack.c.l.b16 %v432
    %v1458 = vunpack.c.l.b16 %v433
    %v1459 = vunpack.c.l.b16 %v434
    %v1460 = vunpack.c.l.b16 %v435
    %v1461 = vunpack.c.l.b16 %v436
    %v1462 = vunpack.c.l.b16 %v437
    %v1463 = vunpack.c.l.b16 %v438
    %v1464 = vunpack.c.l.b16 %v439
    %v1465 = vunpack.c.l.b16 %v440
    %v1466 = vunpack.c.l.b16 %v441
    %v1467 = vunpack.c.l.b16 %v442
    %v1468 = vunpack.c.l.b16 %v443
    %v1469 = vunpack.c.l.b16 %v444
    %v1470 = vunpack.c.l.b16 %v445
    %v1471 = vunpack.c.l.b16 %v446
    %v1472 = vunpack.c.l.b16 %v447
    %v1473 = vunpack.c.l.b16 %v448
    %v1474 = vunpack.c.l.b16 %v449
    %v1475 = vunpack.c.l.b16 %v450
    %v1476 = vunpack.c.l.b16 %v451
    %v1477 = vunpack.c.l.b16 %v452
    %v1478 = vunpack.c.l.b16 %v453
    %v1479 = vunpack.c.l.b16 %v454
    %v1480 = vunpack.c.l.b16 %v455
    %v1481 = vunpack.c.l.b16 %v456
    %v1482 = vunpack.c.l.b16 %v457
    %v1483 = vunpack.c.l.b16 %v458
    %v1484 = vunpack.c.l.b16 %v459
    %v1485 = vunpack.c.l.b16 %v460
    %v1486 = vunpack.c.l.b16 %v461
    %v1487 = vunpack.c.l.b16 %v462
    %v1488 = vunpack.c.l.b16 %v463
    %v1489 = vunpack.c.l.b16 %v464
    %v1490 = vunpack.c.l.b16 %v465
    %v1491 = vunpack.c.l.b16 %v466
    %v1492 = vunpack.c.l.b16 %v467
    %v1493 = vunpack.c.l.b16 %v468
    %v1494 = vunpack.c.l.b16 %v469
    %v1495 = vunpack.c.l.b16 %v470
    %v1496 = vunpack.c.l.b16 %v471
    %v1497 = vunpack.c.l.b16 %v472
    %v1498 = vunpack.c.l.b16 %v473
    %v1499 = vunpack.c.l.b16 %v474
    %v1500 = vunpack.c.l.b16 %v475
    %v1501 = vunpack.c.l.b16 %v476
    %v1502 = vunpack.c.l.b16 %v477
    %v1503 = vunpack.c.l.b16 %v478
    %v1504 = vunpack.c.l.b16 %v479
    %v1505 = vunpack.c.l.b16 %v480
    %v1506 = vunpack.c.l.b16 %v481
    %v1507 = vunpack.c.l.b16 %v482
    %v1508 = vunpack.c.l.b16 %v483
    %v1509 = vunpack.c.l.b16 %v484
    %v1510 = vunpack.c.l.b16 %v485
    %v1511 = vunpack.c.l.b16 %v486
    %v1512 = vunpack.c.l.b16 %v487
    %v1513 = vunpack.c.l.b16 %v488
    %v1514 = vunpack.c.l.b16 %v489
    %v1515 = vunpack.c.l.b16 %v490
    %v1516 = vunpack.c.l.b16 %v491
    %v1517 = vunpack.c.l.b16 %v492
    %v1518 = vunpack.c.l.b16 %v493
    %v1519 = vunpack.c.l.b16 %v494
    %v1520 = vunpack.c.l.b16 %v495
    %v1521 = vunpack.c.l.b16 %v496
    %v1522 = vunpack.c.l.b16 %v497
    %v1523 = vunpack.c.l.b16 %v498
    %v1524 = vunpack.c.l.b16 %v499
    %v1525 = vunpack.c.l.b16 %v500
    %v1526 = vunpack.c.l.b16 %v501
    %v1527 = vunpack.c.l.b16 %v502
    %v1528 = vunpack.c.l.b16 %v503
    %v1529 = vunpack.c.l.b16 %v504
    %v1530 = vunpack.c.l.b16 %v505
    %v1531 = vunpack.c.l.b16 %v506
    %v1532 = vunpack.c.l.b16 %v507
    %v1533 = vunpack.c.l.b16 %v508
    %v1534 = vunpack.c.l.b16 %v509
    %v1535 = vunpack.c.l.b16 %v510
    %v1536 = vunpack.c.l.b16 %v511
    %v1537 = vunpack.c.l.b16 %v512
    %v1538 = vunpack.c.l.b16 %v513
    %v1539 = vunpack.c.l.b16 %v514
    %v1540 = vunpack.c.l.b16 %v515
    %v1541 = vunpack.c.l.b16 %v516
    %v1542 = vunpack.c.l.b16 %v517
    %v1543 = vunpack.c.l.b16 %v518
    %v1544 = vunpack.c.l.b16 %v519
    %v1545 = vunpack.c.l.b16 %v520
    %v1546 = vunpack.c.l.b16 %v521
    %v1547 = vunpack.c.l.b16 %v522
    %v1548 = vunpack.c.l.b16 %v523
    %v1549 = vunpack.c.l.b16 %v524
    %v1550 = vunpack.c.l.b16 %v525
    %v1551 = vunpack.c.l.b16 %v526
    %v1552 = vunpack.c.l.b16 %v527
    %v1553 = vunpack.c.l.b16 %v528
    %v1554 = vunpack.c.l.b16 %v529
    %v1555 = vunpack.c.l.b16 %v530
    %v1556 = vunpack.c.l.b16 %v531
    %v1557 = vunpack.c.l.b16 %v532
    %v1558 = vunpack.c.l.b16 %v533
    %v1559 = vunpack.c.l.b16 %v534
    %v1560 = vunpack.c.l.b16 %v535
    %v1561 = vunpack.c.l.b16 %v536
    %v1562 = vunpack.c.l.b16 %v537
    %v1563 = vunpack.c.l.b16 %v538
    %v1564 = vunpack.c.l.b16 %v539
    %v1565 = vunpack.c.l.b16 %v540
    %v1566 = vunpack.c.l.b16 %v541
    %v1567 = vunpack.c.l.b16 %v542
    %v1568 = vunpack.c.l.b16 %v543
    %v1569 = vunpack.c.l.b16 %v544
    %v1570 = vunpack.c.l.b16 %v545
    %v1571 = vunpack.c.l.b16 %v546
    %v1572 = vunpack.c.l.b16 %v547
    %v1573 = vunpack.c.l.b16 %v548
    %v1574 = vunpack.c.l.b16 %v549
    %v1575 = vunpack.c.l.b16 %v550
    %v1576 = vunpack.c.l.b16 %v551
    %v1577 = vunpack.c.l.b16 %v552
    %v1578 = vunpack.c.l.b16 %v553
    %v1579 = vunpack.c.l.b16 %v554
    %v1580 = vunpack.c.l.b16 %v555
    %v1581 = vunpack.c.l.b16 %v556
    %v1582 = vunpack.c.l.b16 %v557
    %v1583 = vunpack.c.l.b16 %v558
    %v1584 = vunpack.c.l.b16 %v559
    %v1585 = vunpack.c.l.b16 %v560
    %v1586 = vunpack.c.l.b16 %v561
    %v1587 = vunpack.c.l.b16 %v562
    %v1588 = vunpack.c.l.b16 %v563
    %v1589 = vunpack.c.l.b16 %v564
    %v1590 = vunpack.c.l.b16 %v565
    %v1591 = vunpack.c.l.b16 %v566
    %v1592 = vunpack.c.l.b16 %v567
    %v1593 = vunpack.c.l.b16 %v568
    %v1594 = vunpack.c.l.b16 %v569
    %v1595 = vunpack.c.l.b16 %v570
    %v1596 = vunpack.c.l.b16 %v571
    %v1597 = vunpack.c.l.b16 %v572
    %v1598 = vunpack.c.l.b16 %v573
    %v1599 = vunpack.c.l.b16 %v574
    %v1600 = vunpack.c.l.b16 %v575
    %v1601 = vunpack.c.l.b16 %v576
    %v1602 = vunpack.c.l.b16 %v577
    %v1603 = vunpack.c.l.b16 %v578
    %v1604 = vunpack.c.l.b16 %v579
    %v1605 = vunpack.c.l.b16 %v580
    %v1606 = vunpack.c.l.b16 %v581
    %v1607 = vunpack.c.l.b16 %v582
    %v1608 = vunpack.c.l.b16 %v583
    %v1609 = vunpack.c.l.b16 %v584
    %v1610 = vunpack.c.l.b16 %v585
    %v1611 = vunpack.c.l.b16 %v586
    %v1612 = vunpack.c.l.b16 %v587
    %v1613 = vunpack.c.l.b16 %v588
    %v1614 = vunpack.c.l.b16 %v589
    %v1615 = vunpack.c.l.b16 %v590
    %v1616 = vunpack.c.l.b16 %v591
    %v1617 = vunpack.c.l.b16 %v592
    %v1618 = vunpack.c.l.b16 %v593
    %v1619 = vunpack.c.l.b16 %v594
    %v1620 = vunpack.c.l.b16 %v595
    %v1621 = vunpack.c.l.b16 %v596
    %v1622 = vunpack.c.l.b16 %v597
    %v1623 = vunpack.c.l.b16 %v598
    %v1624 = vunpack.c.l.b16 %v599
    %v1625 = vunpack.c.l.b16 %v600
    %v1626 = vunpack.c.l.b16 %v601
    %v1627 = vunpack.c.l.b16 %v602
    %v1628 = vunpack.c.l.b16 %v603
    %v1629 = vunpack.c.l.b16 %v604
    %v1630 = vunpack.c.l.b16 %v605
    %v1631 = vunpack.c.l.b16 %v606
    %v1632 = vunpack.c.l.b16 %v607
    %v1633 = vunpack.c.l.b16 %v608
    %v1634 = vunpack.c.l.b16 %v609
    %v1635 = vunpack.c.l.b16 %v610
    %v1636 = vunpack.c.l.b16 %v611
    %v1637 = vunpack.c.l.b16 %v612
    %v1638 = vunpack.c.l.b16 %v613
    %v1639 = vunpack.c.l.b16 %v614
    %v1640 = vunpack.c.l.b16 %v615
    %v1641 = vunpack.c.l.b16 %v616
    %v1642 = vunpack.c.l.b16 %v617
    %v1643 = vunpack.c.l.b16 %v618
    %v1644 = vunpack.c.l.b16 %v619
    %v1645 = vunpack.c.l.b16 %v620
    %v1646 = vunpack.c.l.b16 %v621
    %v1647 = vunpack.c.l.b16 %v622
    %v1648 = vunpack.c.l.b16 %v623
    %v1649 = vunpack.c.l.b16 %v624
    %v1650 = vunpack.c.l.b16 %v625
    %v1651 = vunpack.c.l.b16 %v626
    %v1652 = vunpack.c.l.b16 %v627
    %v1653 = vunpack.c.l.b16 %v628
    %v1654 = vunpack.c.l.b16 %v629
    %v1655 = vunpack.c.l.b16 %v630
    %v1656 = vunpack.c.l.b16 %v631
    %v1657 = vunpack.c.l.b16 %v632
    %v1658 = vunpack.c.l.b16 %v633
    %v1659 = vunpack.c.l.b16 %v634
    %v1660 = vunpack.c.l.b16 %v635
    %v1661 = vunpack.c.l.b16 %v636
    %v1662 = vunpack.c.l.b16 %v637
    %v1663 = vunpack.c.l.b16 %v638
    %v1664 = vunpack.c.l.b16 %v639
    %v1665 = vunpack.c.l.b16 %v640
    %v1666 = vunpack.c.l.b16 %v641
    %v1667 = vunpack.c.l.b16 %v642
    %v1668 = vunpack.c.l.b16 %v643
    %v1669 = vunpack.c.l.b16 %v644
    %v1670 = vunpack.c.l.b16 %v645
    %v1671 = vunpack.c.l.b16 %v646
    %v1672 = vunpack.c.l.b16 %v647
    %v1673 = vunpack.c.l.b16 %v648
    %v1674 = vunpack.c.l.b16 %v649
    %v1675 = vunpack.c.l.b16 %v650
    %v1676 = vunpack.c.l.b16 %v651
    %v1677 = vunpack.c.l.b16 %v652
    %v1678 = vunpack.c.l.b16 %v653
    %v1679 = vunpack.c.l.b16 %v654
    %v1680 = vunpack.c.l.b16 %v655
    %v1681 = vunpack.c.l.b16 %v656
    %v1682 = vunpack.c.l.b16 %v657
    %v1683 = vunpack.c.l.b16 %v658
    %v1684 = vunpack.c.l.b16 %v659
    %v1685 = vunpack.c.l.b16 %v660
    %v1686 = vunpack.c.l.b16 %v661
    %v1687 = vunpack.c.l.b16 %v662
    %v1688 = vunpack.c.l.b16 %v663
    %v1689 = vunpack.c.l.b16 %v664
    %v1690 = vunpack.c.l.b16 %v665
    %v1691 = vunpack.c.l.b16 %v666
    %v1692 = vunpack.c.l.b16 %v667
    %v1693 = vunpack.c.l.b16 %v668
    %v1694 = vunpack.c.l.b16 %v669
    %v1695 = vunpack.c.l.b16 %v670
    %v1696 = vunpack.c.l.b16 %v671
    %v1697 = vunpack.c.l.b16 %v672
    %v1698 = vunpack.c.l.b16 %v673
    %v1699 = vunpack.c.l.b16 %v674
    %v1700 = vunpack.c.l.b16 %v675
    %v1701 = vunpack.c.l.b16 %v676
    %v1702 = vunpack.c.l.b16 %v677
    %v1703 = vunpack.c.l.b16 %v678
    %v1704 = vunpack.c.l.b16 %v679
    %v1705 = vunpack.c.l.b16 %v680
    %v1706 = vunpack.c.l.b16 %v681
    %v1707 = vunpack.c.l.b16 %v682
    %v1708 = vunpack.c.l.b16 %v683
    %v1709 = vunpack.c.l.b16 %v684
    %v1710 = vunpack.c.l.b16 %v685
    %v1711 = vunpack.c.l.b16 %v686
    %v1712 = vunpack.c.l.b16 %v687
    %v1713 = vunpack.c.l.b16 %v688
    %v1714 = vpack.c.b16 %v1203, %v1202
    %v1715 = vpack.c.b16 %v1205, %v1204
    %v1716 = vpack.c.b16 %v1207, %v1206
    %v1717 = vpack.c.b16 %v1209, %v1208
    %v1718 = vpack.c.b16 %v1211, %v1210
    %v1719 = vpack.c.b16 %v1213, %v1212
    %v1720 = vpack.c.b16 %v1215, %v1214
    %v1721 = vpack.c.b16 %v1217, %v1216
    %v1722 = vpack.c.b16 %v1219, %v1218
    %v1723 = vpack.c.b16 %v1221, %v1220
    %v1724 = vpack.c.b16 %v1223, %v1222
    %v1725 = vpack.c.b16 %v1225, %v1224
    %v1726 = vpack.c.b16 %v1227, %v1226
    %v1727 = vpack.c.b16 %v1229, %v1228
    %v1728 = vpack.c.b16 %v1231, %v1230
    %v1729 = vpack.c.b16 %v1233, %v1232
    %v1730 = vpack.c.b16 %v1235, %v1234
    %v1731 = vpack.c.b16 %v1237, %v1236
    %v1732 = vpack.c.b16 %v1239, %v1238
    %v1733 = vpack.c.b16 %v1241, %v1240
    %v1734 = vpack.c.b16 %v1243, %v1242
    %v1735 = vpack.c.b16 %v1245, %v1244
    %v1736 = vpack.c.b16 %v1247, %v1246
    %v1737 = vpack.c.b16 %v1249, %v1248
    %v1738 = vpack.c.b16 %v1251, %v1250
    %v1739 = vpack.c.b16 %v1253, %v1252
    %v1740 = vpack.c.b16 %v1255, %v1254
    %v1741 = vpack.c.b16 %v1257, %v1256
    %v1742 = vpack.c.b16 %v1259, %v1258
    %v1743 = vpack.c.b16 %v1261, %v1260
    %v1744 = vpack.c.b16 %v1263, %v1262
    %v1745 = vpack.c.b16 %v1265, %v1264
    %v1746 = vpack.c.b16 %v1267, %v1266
    %v1747 = vpack.c.b16 %v1269, %v1268
    %v1748 = vpack.c.b16 %v1271, %v1270
    %v1749 = vpack.c.b16 %v1273, %v1272
    %v1750 = vpack.c.b16 %v1275, %v1274
    %v1751 = vpack.c.b16 %v1277, %v1276
    %v1752 = vpack.c.b16 %v1279, %v1278
    %v1753 = vpack.c.b16 %v1281, %v1280
    %v1754 = vpack.c.b16 %v1283, %v1282
    %v1755 = vpack.c.b16 %v1285, %v1284
    %v1756 = vpack.c.b16 %v1287, %v1286
    %v1757 = vpack.c.b16 %v1289, %v1288
    %v1758 = vpack.c.b16 %v1291, %v1290
    %v1759 = vpack.c.b16 %v1293, %v1292
    %v1760 = vpack.c.b16 %v1295, %v1294
    %v1761 = vpack.c.b16 %v1297, %v1296
    %v1762 = vpack.c.b16 %v1299, %v1298
    %v1763 = vpack.c.b16 %v1301, %v1300
    %v1764 = vpack.c.b16 %v1303, %v1302
    %v1765 = vpack.c.b16 %v1305, %v1304
    %v1766 = vpack.c.b16 %v1307, %v1306
    %v1767 = vpack.c.b16 %v1309, %v1308
    %v1768 = vpack.c.b16 %v1311, %v1310
    %v1769 = vpack.c.b16 %v1313, %v1312
    %v1770 = vpack.c.b16 %v1315, %v1314
    %v1771 = vpack.c.b16 %v1317, %v1316
    %v1772 = vpack.c.b16 %v1319, %v1318
    %v1773 = vpack.c.b16 %v1321, %v1320
    %v1774 = vpack.c.b16 %v1323, %v1322
    %v1775 = vpack.c.b16 %v1325, %v1324
    %v1776 = vpack.c.b16 %v1327, %v1326
    %v1777 = vpack.c.b16 %v1329, %v1328
    %v1778 = vpack.c.b16 %v1331, %v1330
    %v1779 = vpack.c.b16 %v1333, %v1332
    %v1780 = vpack.c.b16 %v1335, %v1334
    %v1781 = vpack.c.b16 %v1337, %v1336
    %v1782 = vpack.c.b16 %v1339, %v1338
    %v1783 = vpack.c.b16 %v1341, %v1340
    %v1784 = vpack.c.b16 %v1343, %v1342
    %v1785 = vpack.c.b16 %v1345, %v1344
    %v1786 = vpack.c.b16 %v1347, %v1346
    %v1787 = vpack.c.b16 %v1349, %v1348
    %v1788 = vpack.c.b16 %v1351, %v1350
    %v1789 = vpack.c.b16 %v1353, %v1352
    %v1790 = vpack.c.b16 %v1355, %v1354
    %v1791 = vpack.c.b16 %v1357, %v1356
    %v1792 = vpack.c.b16 %v1359, %v1358
    %v1793 = vpack.c.b16 %v1361, %v1360
    %v1794 = vpack.c.b16 %v1363, %v1362
    %v1795 = vpack.c.b16 %v1365, %v1364
    %v1796 = vpack.c.b16 %v1367, %v1366
    %v1797 = vpack.c.b16 %v1369, %v1368
    %v1798 = vpack.c.b16 %v1371, %v1370
    %v1799 = vpack.c.b16 %v1373, %v1372
    %v1800 = vpack.c.b16 %v1375, %v1374
    %v1801 = vpack.c.b16 %v1377, %v1376
    %v1802 = vpack.c.b16 %v1379, %v1378
    %v1803 = vpack.c.b16 %v1381, %v1380
    %v1804 = vpack.c.b16 %v1383, %v1382
    %v1805 = vpack.c.b16 %v1385, %v1384
    %v1806 = vpack.c.b16 %v1387, %v1386
    %v1807 = vpack.c.b16 %v1389, %v1388
    %v1808 = vpack.c.b16 %v1391, %v1390
    %v1809 = vpack.c.b16 %v1393, %v1392
    %v1810 = vpack.c.b16 %v1395, %v1394
    %v1811 = vpack.c.b16 %v1397, %v1396
    %v1812 = vpack.c.b16 %v1399, %v1398
    %v1813 = vpack.c.b16 %v1401, %v1400
    %v1814 = vpack.c.b16 %v1403, %v1402
    %v1815 = vpack.c.b16 %v1405, %v1404
    %v1816 = vpack.c.b16 %v1407, %v1406
    %v1817 = vpack.c.b16 %v1409, %v1408
    %v1818 = vpack.c.b16 %v1411, %v1410
    %v1819 = vpack.c.b16 %v1413, %v1412
    %v1820 = vpack.c.b16 %v1415, %v1414
    %v1821 = vpack.c.b16 %v1417, %v1416
    %v1822 = vpack.c.b16 %v1419, %v1418
    %v1823 = vpack.c.b16 %v1421, %v1420
    %v1824 = vpack.c.b16 %v1423, %v1422
    %v1825 = vpack.c.b16 %v1425, %v1424
    %v1826 = vpack.c.b16 %v1427, %v1426
    %v1827 = vpack.c.b16 %v1429, %v1428
    %v1828 = vpack.c.b16 %v1431, %v1430
    %v1829 = vpack.c.b16 %v1433, %v1432
    %v1830 = vpack.c.b16 %v1435, %v1434
    %v1831 = vpack.c.b16 %v1437, %v1436
    %v1832 = vpack.c.b16 %v1439, %v1438
    %v1833 = vpack.c.b16 %v1441, %v1440
    %v1834 = vpack.c.b16 %v1443, %v1442
    %v1835 = vpack.c.b16 %v1445, %v1444
    %v1836 = vpack.c.b16 %v1447, %v1446
    %v1837 = vpack.c.b16 %v1449, %v1448
    %v1838 = vpack.c.b16 %v1451, %v1450
    %v1839 = vpack.c.b16 %v1453, %v1452
    %v1840 = vpack.c.b16 %v1455, %v1454
    %v1841 = vpack.c.b16 %v1457, %v1456
    %v1842 = vpack.c.b16 %v1459, %v1458
    %v1843 = vpack.c.b16 %v1461, %v1460
    %v1844 = vpack.c.b16 %v1463, %v1462
    %v1845 = vpack.c.b16 %v1465, %v1464
    %v1846 = vpack.c.b16 %v1467, %v1466
    %v1847 = vpack.c.b16 %v1469, %v1468
    %v1848 = vpack.c.b16 %v1471, %v1470
    %v1849 = vpack.c.b16 %v1473, %v1472
    %v1850 = vpack.c.b16 %v1475, %v1474
    %v1851 = vpack.c.b16 %v1477, %v1476
    %v1852 = vpack.c.b16 %v1479, %v1478
    %v1853 = vpack.c.b16 %v1481, %v1480
    %v1854 = vpack.c.b16 %v1483, %v1482
    %v1855 = vpack.c.b16 %v1485, %v1484
    %v1856 = vpack.c.b16 %v1487, %v1486
    %v1857 = vpack.c.b16 %v1489, %v1488
    %v1858 = vpack.c.b16 %v1491, %v1490
    %v1859 = vpack.c.b16 %v1493, %v1492
    %v1860 = vpack.c.b16 %v1495, %v1494
    %v1861 = vpack.c.b16 %v1497, %v1496
    %v1862 = vpack.c.b16 %v1499, %v1498
    %v1863 = vpack.c.b16 %v1501, %v1500
    %v1864 = vpack.c.b16 %v1503, %v1502
    %v1865 = vpack.c.b16 %v1505, %v1504
    %v1866 = vpack.c.b16 %v1507, %v1506
    %v1867 = vpack.c.b16 %v1509, %v1508
    %v1868 = vpack.c.b16 %v1511, %v1510
    %v1869 = vpack.c.b16 %v1513, %v1512
    %v1870 = vpack.c.b16 %v1515, %v1514
    %v1871 = vpack.c.b16 %v1517, %v1516
    %v1872 = vpack.c.b16 %v1519, %v1518
    %v1873 = vpack.c.b16 %v1521, %v1520
    %v1874 = vpack.c.b16 %v1523, %v1522
    %v1875 = vpack.c.b16 %v1525, %v1524
    %v1876 = vpack.c.b16 %v1527, %v1526
    %v1877 = vpack.c.b16 %v1529, %v1528
    %v1878 = vpack.c.b16 %v1531, %v1530
    %v1879 = vpack.c.b16 %v1533, %v1532
    %v1880 = vpack.c.b16 %v1535, %v1534
    %v1881 = vpack.c.b16 %v1537, %v1536
    %v1882 = vpack.c.b16 %v1539, %v1538
    %v1883 = vpack.c.b16 %v1541, %v1540
    %v1884 = vpack.c.b16 %v1543, %v1542
    %v1885 = vpack.c.b16 %v1545, %v1544
    %v1886 = vpack.c.b16 %v1547, %v1546
    %v1887 = vpack.c.b16 %v1549, %v1548
    %v1888 = vpack.c.b16 %v1551, %v1550
    %v1889 = vpack.c.b16 %v1553, %v1552
    %v1890 = vpack.c.b16 %v1555, %v1554
    %v1891 = vpack.c.b16 %v1557, %v1556
    %v1892 = vpack.c.b16 %v1559, %v1558
    %v1893 = vpack.c.b16 %v1561, %v1560
    %v1894 = vpack.c.b16 %v1563, %v1562
    %v1895 = vpack.c.b16 %v1565, %v1564
    %v1896 = vpack.c.b16 %v1567, %v1566
    %v1897 = vpack.c.b16 %v1569, %v1568
    %v1898 = vpack.c.b16 %v1571, %v1570
    %v1899 = vpack.c.b16 %v1573, %v1572
    %v1900 = vpack.c.b16 %v1575, %v1574
    %v1901 = vpack.c.b16 %v1577, %v1576
    %v1902 = vpack.c.b16 %v1579, %v1578
    %v1903 = vpack.c.b16 %v1581, %v1580
    %v1904 = vpack.c.b16 %v1583, %v1582
    %v1905 = vpack.c.b16 %v1585, %v1584
    %v1906 = vpack.c.b16 %v1587, %v1586
    %v1907 = vpack.c.b16 %v1589, %v1588
    %v1908 = vpack.c.b16 %v1591, %v1590
    %v1909 = vpack.c.b16 %v1593, %v1592
    %v1910 = vpack.c.b16 %v1595, %v1594
    %v1911 = vpack.c.b16 %v1597, %v1596
    %v1912 = vpack.c.b16 %v1599, %v1598
    %v1913 = vpack.c.b16 %v1601, %v1600
    %v1914 = vpack.c.b16 %v1603, %v1602
    %v1915 = vpack.c.b16 %v1605, %v1604
    %v1916 = vpack.c.b16 %v1607, %v1606
    %v1917 = vpack.c.b16 %v1609, %v1608
    %v1918 = vpack.c.b16 %v1611, %v1610
    %v1919 = vpack.c.b16 %v1613, %v1612
    %v1920 = vpack.c.b16 %v1615, %v1614
    %v1921 = vpack.c.b16 %v1617, %v1616
    %v1922 = vpack.c.b16 %v1619, %v1618
    %v1923 = vpack.c.b16 %v1621, %v1620
    %v1924 = vpack.c.b16 %v1623, %v1622
    %v1925 = vpack.c.b16 %v1625, %v1624
    %v1926 = vpack.c.b16 %v1627, %v1626
    %v1927 = vpack.c.b16 %v1629, %v1628
    %v1928 = vpack.c.b16 %v1631, %v1630
    %v1929 = vpack.c.b16 %v1633, %v1632
    %v1930 = vpack.c.b16 %v1635, %v1634
    %v1931 = vpack.c.b16 %v1637, %v1636
    %v1932 = vpack.c.b16 %v1639, %v1638
    %v1933 = vpack.c.b16 %v1641, %v1640
    %v1934 = vpack.c.b16 %v1643, %v1642
    %v1935 = vpack.c.b16 %v1645, %v1644
    %v1936 = vpack.c.b16 %v1647, %v1646
    %v1937 = vpack.c.b16 %v1649, %v1648
    %v1938 = vpack.c.b16 %v1651, %v1650
    %v1939 = vpack.c.b16 %v1653, %v1652
    %v1940 = vpack.c.b16 %v1655, %v1654
    %v1941 = vpack.c.b16 %v1657, %v1656
    %v1942 = vpack.c.b16 %v1659, %v1658
    %v1943 = vpack.c.b16 %v1661, %v1660
    %v1944 = vpack.c.b16 %v1663, %v1662
    %v1945 = vpack.c.b16 %v1665, %v1664
    %v1946 = vpack.c.b16 %v1667, %v1666
    %v1947 = vpack.c.b16 %v1669, %v1668
    %v1948 = vpack.c.b16 %v1671, %v1670
    %v1949 = vpack.c.b16 %v1673, %v1672
    %v1950 = vpack.c.b16 %v1675, %v1674
    %v1951 = vpack.c.b16 %v1677, %v1676
    %v1952 = vpack.c.b16 %v1679, %v1678
    %v1953 = vpack.c.b16 %v1681, %v1680
    %v1954 = vpack.c.b16 %v1683, %v1682
    %v1955 = vpack.c.b16 %v1685, %v1684
    %v1956 = vpack.c.b16 %v1687, %v1686
    %v1957 = vpack.c.b16 %v1689, %v1688
    %v1958 = vpack.c.b16 %v1691, %v1690
    %v1959 = vpack.c.b16 %v1693, %v1692
    %v1960 = vpack.c.b16 %v1695, %v1694
    %v1961 = vpack.c.b16 %v1697, %v1696
    %v1962 = vpack.c.b16 %v1699, %v1698
    %v1963 = vpack.c.b16 %v1701, %v1700
    %v1964 = vpack.c.b16 %v1703, %v1702
    %v1965 = vpack.c.b16 %v1705, %v1704
    %v1966 = vpack.c.b16 %v1707, %v1706
    %v1967 = vpack.c.b16 %v1709, %v1708
    %v1968 = vpack.c.b16 %v1711, %v1710
    %v1969 = vpack.c.b16 %v1713, %v1712
    %2226 = vmatpush.bf16.msra.mxu0 %v1721
    %2227 = vmatpush.bf16.msra.mxu0 %v1720
    %2228 = vmatpush.bf16.msra.mxu0 %v1719
    %2229 = vmatpush.bf16.msra.mxu0 %v1718
    %2230 = vmatpush.bf16.msra.mxu0 %v1717
    %2231 = vmatpush.bf16.msra.mxu0 %v1716
    %2232 = vmatpush.bf16.msra.mxu0 %v1715
    %2233 = vmatpush.bf16.msra.mxu0 %v1714
    %2234 = vmatmul.bf16.gmra.mxu0 %v145
    %v2235 = vpop.f32.mrf.mxu0
    %v2236 = vadd.f32 %v689, %v2235
    %v2237 = vpop.f32.mrf.mxu0
    %2238 = vdwg.mxu0
    %2239 = vmatpush.bf16.msra.mxu0 %v1729
    %2240 = vmatpush.bf16.msra.mxu0 %v1728
    %2241 = vmatpush.bf16.msra.mxu0 %v1727
    %2242 = vmatpush.bf16.msra.mxu0 %v1726
    %2243 = vmatpush.bf16.msra.mxu0 %v1725
    %2244 = vmatpush.bf16.msra.mxu0 %v1724
    %2245 = vmatpush.bf16.msra.mxu0 %v1723
    %2246 = vmatpush.bf16.msra.mxu0 %v1722
    %2247 = vmatmul.bf16.gmra.mxu0 %v146
    %v2248 = vpop.f32.mrf.mxu0
    %v2249 = vadd.f32 %v2236, %v2248
    %v2250 = vpop.f32.mrf.mxu0
    %2251 = vdwg.mxu0
    %2252 = vmatpush.bf16.msra.mxu0 %v1737
    %2253 = vmatpush.bf16.msra.mxu0 %v1736
    %2254 = vmatpush.bf16.msra.mxu0 %v1735
    %2255 = vmatpush.bf16.msra.mxu0 %v1734
    %2256 = vmatpush.bf16.msra.mxu0 %v1733
    %2257 = vmatpush.bf16.msra.mxu0 %v1732
    %2258 = vmatpush.bf16.msra.mxu0 %v1731
    %2259 = vmatpush.bf16.msra.mxu0 %v1730
    %2260 = vmatmul.bf16.gmra.mxu0 %v147
    %v2261 = vpop.f32.mrf.mxu0
    %v2262 = vadd.f32 %v2249, %v2261
    %v2263 = vpop.f32.mrf.mxu0
    %2264 = vdwg.mxu0
    %2265 = vmatpush.bf16.msra.mxu0 %v1745
    %2266 = vmatpush.bf16.msra.mxu0 %v1744
    %2267 = vmatpush.bf16.msra.mxu0 %v1743
    %2268 = vmatpush.bf16.msra.mxu0 %v1742
    %2269 = vmatpush.bf16.msra.mxu0 %v1741
    %2270 = vmatpush.bf16.msra.mxu0 %v1740
    %2271 = vmatpush.bf16.msra.mxu0 %v1739
    %2272 = vmatpush.bf16.msra.mxu0 %v1738
    %2273 = vmatmul.bf16.gmra.mxu0 %v148
    %v2274 = vpop.f32.mrf.mxu0
    %v2275 = vadd.f32 %v2262, %v2274
    %v2276 = vpop.f32.mrf.mxu0
    %2277 = vdwg.mxu0
    %2278 = vmatpush.bf16.msra.mxu0 %v1753
    %2279 = vmatpush.bf16.msra.mxu0 %v1752
    %2280 = vmatpush.bf16.msra.mxu0 %v1751
    %2281 = vmatpush.bf16.msra.mxu0 %v1750
    %2282 = vmatpush.bf16.msra.mxu0 %v1749
    %2283 = vmatpush.bf16.msra.mxu0 %v1748
    %2284 = vmatpush.bf16.msra.mxu0 %v1747
    %2285 = vmatpush.bf16.msra.mxu0 %v1746
    %2286 = vmatmul.bf16.gmra.mxu0 %v149
    %v2287 = vpop.f32.mrf.mxu0
    %v2288 = vadd.f32 %v2275, %v2287
    %v2289 = vpop.f32.mrf.mxu0
    %2290 = vdwg.mxu0
    %2291 = vmatpush.bf16.msra.mxu0 %v1761
    %2292 = vmatpush.bf16.msra.mxu0 %v1760
    %2293 = vmatpush.bf16.msra.mxu0 %v1759
    %2294 = vmatpush.bf16.msra.mxu0 %v1758
    %2295 = vmatpush.bf16.msra.mxu0 %v1757
    %2296 = vmatpush.bf16.msra.mxu0 %v1756
    %2297 = vmatpush.bf16.msra.mxu0 %v1755
    %2298 = vmatpush.bf16.msra.mxu0 %v1754
    %2299 = vmatmul.bf16.gmra.mxu0 %v150
    %v2300 = vpop.f32.mrf.mxu0
    %v2301 = vadd.f32 %v2288, %v2300
    %v2302 = vpop.f32.mrf.mxu0
    %2303 = vdwg.mxu0
    %2304 = vmatpush.bf16.msra.mxu0 %v1769
    %2305 = vmatpush.bf16.msra.mxu0 %v1768
    %2306 = vmatpush.bf16.msra.mxu0 %v1767
    %2307 = vmatpush.bf16.msra.mxu0 %v1766
    %2308 = vmatpush.bf16.msra.mxu0 %v1765
    %2309 = vmatpush.bf16.msra.mxu0 %v1764
    %2310 = vmatpush.bf16.msra.mxu0 %v1763
    %2311 = vmatpush.bf16.msra.mxu0 %v1762
    %2312 = vmatmul.bf16.gmra.mxu0 %v151
    %v2313 = vpop.f32.mrf.mxu0
    %v2314 = vadd.f32 %v2301, %v2313
    %v2315 = vpop.f32.mrf.mxu0
    %2316 = vdwg.mxu0
    %2317 = vmatpush.bf16.msra.mxu0 %v1777
    %2318 = vmatpush.bf16.msra.mxu0 %v1776
    %2319 = vmatpush.bf16.msra.mxu0 %v1775
    %2320 = vmatpush.bf16.msra.mxu0 %v1774
    %2321 = vmatpush.bf16.msra.mxu0 %v1773
    %2322 = vmatpush.bf16.msra.mxu0 %v1772
    %2323 = vmatpush.bf16.msra.mxu0 %v1771
    %2324 = vmatpush.bf16.msra.mxu0 %v1770
    %2325 = vmatmul.bf16.gmra.mxu0 %v152
    %v2326 = vpop.f32.mrf.mxu0
    %v2327 = vadd.f32 %v2314, %v2326
    %v2328 = vpop.f32.mrf.mxu0
    %2329 = vdwg.mxu0
    %2330 = vmatpush.bf16.msra.mxu0 %v1785
    %2331 = vmatpush.bf16.msra.mxu0 %v1784
    %2332 = vmatpush.bf16.msra.mxu0 %v1783
    %2333 = vmatpush.bf16.msra.mxu0 %v1782
    %2334 = vmatpush.bf16.msra.mxu0 %v1781
    %2335 = vmatpush.bf16.msra.mxu0 %v1780
    %2336 = vmatpush.bf16.msra.mxu0 %v1779
    %2337 = vmatpush.bf16.msra.mxu0 %v1778
    %2338 = vmatmul.bf16.gmra.mxu0 %v153
    %v2339 = vpop.f32.mrf.mxu0
    %v2340 = vadd.f32 %v2327, %v2339
    %v2341 = vpop.f32.mrf.mxu0
    %2342 = vdwg.mxu0
    %2343 = vmatpush.bf16.msra.mxu0 %v1793
    %2344 = vmatpush.bf16.msra.mxu0 %v1792
    %2345 = vmatpush.bf16.msra.mxu0 %v1791
    %2346 = vmatpush.bf16.msra.mxu0 %v1790
    %2347 = vmatpush.bf16.msra.mxu0 %v1789
    %2348 = vmatpush.bf16.msra.mxu0 %v1788
    %2349 = vmatpush.bf16.msra.mxu0 %v1787
    %2350 = vmatpush.bf16.msra.mxu0 %v1786
    %2351 = vmatmul.bf16.gmra.mxu0 %v154
    %v2352 = vpop.f32.mrf.mxu0
    %v2353 = vadd.f32 %v2340, %v2352
    %v2354 = vpop.f32.mrf.mxu0
    %2355 = vdwg.mxu0
    %2356 = vmatpush.bf16.msra.mxu0 %v1801
    %2357 = vmatpush.bf16.msra.mxu0 %v1800
    %2358 = vmatpush.bf16.msra.mxu0 %v1799
    %2359 = vmatpush.bf16.msra.mxu0 %v1798
    %2360 = vmatpush.bf16.msra.mxu0 %v1797
    %2361 = vmatpush.bf16.msra.mxu0 %v1796
    %2362 = vmatpush.bf16.msra.mxu0 %v1795
    %2363 = vmatpush.bf16.msra.mxu0 %v1794
    %2364 = vmatmul.bf16.gmra.mxu0 %v155
    %v2365 = vpop.f32.mrf.mxu0
    %v2366 = vadd.f32 %v2353, %v2365
    %v2367 = vpop.f32.mrf.mxu0
    %2368 = vdwg.mxu0
    %2369 = vmatpush.bf16.msra.mxu0 %v1809
    %2370 = vmatpush.bf16.msra.mxu0 %v1808
    %2371 = vmatpush.bf16.msra.mxu0 %v1807
    %2372 = vmatpush.bf16.msra.mxu0 %v1806
    %2373 = vmatpush.bf16.msra.mxu0 %v1805
    %2374 = vmatpush.bf16.msra.mxu0 %v1804
    %2375 = vmatpush.bf16.msra.mxu0 %v1803
    %2376 = vmatpush.bf16.msra.mxu0 %v1802
    %2377 = vmatmul.bf16.gmra.mxu0 %v156
    %v2378 = vpop.f32.mrf.mxu0
    %v2379 = vadd.f32 %v2366, %v2378
    %v2380 = vpop.f32.mrf.mxu0
    %2381 = vdwg.mxu0
    %2382 = vmatpush.bf16.msra.mxu0 %v1817
    %2383 = vmatpush.bf16.msra.mxu0 %v1816
    %2384 = vmatpush.bf16.msra.mxu0 %v1815
    %2385 = vmatpush.bf16.msra.mxu0 %v1814
    %2386 = vmatpush.bf16.msra.mxu0 %v1813
    %2387 = vmatpush.bf16.msra.mxu0 %v1812
    %2388 = vmatpush.bf16.msra.mxu0 %v1811
    %2389 = vmatpush.bf16.msra.mxu0 %v1810
    %2390 = vmatmul.bf16.gmra.mxu0 %v157
    %v2391 = vpop.f32.mrf.mxu0
    %v2392 = vadd.f32 %v2379, %v2391
    %v2393 = vpop.f32.mrf.mxu0
    %2394 = vdwg.mxu0
    %2395 = vmatpush.bf16.msra.mxu0 %v1825
    %2396 = vmatpush.bf16.msra.mxu0 %v1824
    %2397 = vmatpush.bf16.msra.mxu0 %v1823
    %2398 = vmatpush.bf16.msra.mxu0 %v1822
    %2399 = vmatpush.bf16.msra.mxu0 %v1821
    %2400 = vmatpush.bf16.msra.mxu0 %v1820
    %2401 = vmatpush.bf16.msra.mxu0 %v1819
    %2402 = vmatpush.bf16.msra.mxu0 %v1818
    %2403 = vmatmul.bf16.gmra.mxu0 %v158
    %v2404 = vpop.f32.mrf.mxu0
    %v2405 = vadd.f32 %v2392, %v2404
    %v2406 = vpop.f32.mrf.mxu0
    %2407 = vdwg.mxu0
    %2408 = vmatpush.bf16.msra.mxu0 %v1833
    %2409 = vmatpush.bf16.msra.mxu0 %v1832
    %2410 = vmatpush.bf16.msra.mxu0 %v1831
    %2411 = vmatpush.bf16.msra.mxu0 %v1830
    %2412 = vmatpush.bf16.msra.mxu0 %v1829
    %2413 = vmatpush.bf16.msra.mxu0 %v1828
    %2414 = vmatpush.bf16.msra.mxu0 %v1827
    %2415 = vmatpush.bf16.msra.mxu0 %v1826
    %2416 = vmatmul.bf16.gmra.mxu0 %v159
    %v2417 = vpop.f32.mrf.mxu0
    %v2418 = vadd.f32 %v2405, %v2417
    %v2419 = vpop.f32.mrf.mxu0
    %2420 = vdwg.mxu0
    %2421 = vmatpush.bf16.msra.mxu0 %v1841
    %2422 = vmatpush.bf16.msra.mxu0 %v1840
    %2423 = vmatpush.bf16.msra.mxu0 %v1839
    %2424 = vmatpush.bf16.msra.mxu0 %v1838
    %2425 = vmatpush.bf16.msra.mxu0 %v1837
    %2426 = vmatpush.bf16.msra.mxu0 %v1836
    %2427 = vmatpush.bf16.msra.mxu0 %v1835
    %2428 = vmatpush.bf16.msra.mxu0 %v1834
    %2429 = vmatmul.bf16.gmra.mxu0 %v160
    %v2430 = vpop.f32.mrf.mxu0
    %v2431 = vadd.f32 %v2418, %v2430
    %v2432 = vpop.f32.mrf.mxu0
    %2433 = vdwg.mxu0
    %2434 = vmatpush.bf16.msra.mxu0 %v1849
    %2435 = vmatpush.bf16.msra.mxu0 %v1848
    %2436 = vmatpush.bf16.msra.mxu0 %v1847
    %2437 = vmatpush.bf16.msra.mxu0 %v1846
    %2438 = vmatpush.bf16.msra.mxu0 %v1845
    %2439 = vmatpush.bf16.msra.mxu0 %v1844
    %2440 = vmatpush.bf16.msra.mxu0 %v1843
    %2441 = vmatpush.bf16.msra.mxu0 %v1842
    %2442 = vmatmul.bf16.gmra.mxu0 %v161
    %v2443 = vpop.f32.mrf.mxu0
    %v2444 = vadd.f32 %v2431, %v2443
    %v2445 = vpop.f32.mrf.mxu0
    %2446 = vdwg.mxu0
    %2447 = vmatpush.bf16.msra.mxu0 %v1857
    %2448 = vmatpush.bf16.msra.mxu0 %v1856
    %2449 = vmatpush.bf16.msra.mxu0 %v1855
    %2450 = vmatpush.bf16.msra.mxu0 %v1854
    %2451 = vmatpush.bf16.msra.mxu0 %v1853
    %2452 = vmatpush.bf16.msra.mxu0 %v1852
    %2453 = vmatpush.bf16.msra.mxu0 %v1851
    %2454 = vmatpush.bf16.msra.mxu0 %v1850
    %2455 = vmatmul.bf16.gmra.mxu0 %v162
    %v2456 = vpop.f32.mrf.mxu0
    %v2457 = vadd.f32 %v2444, %v2456
    %v2458 = vpop.f32.mrf.mxu0
    %2459 = vdwg.mxu0
    %2460 = vmatpush.bf16.msra.mxu0 %v1865
    %2461 = vmatpush.bf16.msra.mxu0 %v1864
    %2462 = vmatpush.bf16.msra.mxu0 %v1863
    %2463 = vmatpush.bf16.msra.mxu0 %v1862
    %2464 = vmatpush.bf16.msra.mxu0 %v1861
    %2465 = vmatpush.bf16.msra.mxu0 %v1860
    %2466 = vmatpush.bf16.msra.mxu0 %v1859
    %2467 = vmatpush.bf16.msra.mxu0 %v1858
    %2468 = vmatmul.bf16.gmra.mxu0 %v163
    %v2469 = vpop.f32.mrf.mxu0
    %v2470 = vadd.f32 %v2457, %v2469
    %v2471 = vpop.f32.mrf.mxu0
    %2472 = vdwg.mxu0
    %2473 = vmatpush.bf16.msra.mxu0 %v1873
    %2474 = vmatpush.bf16.msra.mxu0 %v1872
    %2475 = vmatpush.bf16.msra.mxu0 %v1871
    %2476 = vmatpush.bf16.msra.mxu0 %v1870
    %2477 = vmatpush.bf16.msra.mxu0 %v1869
    %2478 = vmatpush.bf16.msra.mxu0 %v1868
    %2479 = vmatpush.bf16.msra.mxu0 %v1867
    %2480 = vmatpush.bf16.msra.mxu0 %v1866
    %2481 = vmatmul.bf16.gmra.mxu0 %v164
    %v2482 = vpop.f32.mrf.mxu0
    %v2483 = vadd.f32 %v2470, %v2482
    %v2484 = vpop.f32.mrf.mxu0
    %2485 = vdwg.mxu0
    %2486 = vmatpush.bf16.msra.mxu0 %v1881
    %2487 = vmatpush.bf16.msra.mxu0 %v1880
    %2488 = vmatpush.bf16.msra.mxu0 %v1879
    %2489 = vmatpush.bf16.msra.mxu0 %v1878
    %2490 = vmatpush.bf16.msra.mxu0 %v1877
    %2491 = vmatpush.bf16.msra.mxu0 %v1876
    %2492 = vmatpush.bf16.msra.mxu0 %v1875
    %2493 = vmatpush.bf16.msra.mxu0 %v1874
    %2494 = vmatmul.bf16.gmra.mxu0 %v165
    %v2495 = vpop.f32.mrf.mxu0
    %v2496 = vadd.f32 %v2483, %v2495
    %v2497 = vpop.f32.mrf.mxu0
    %2498 = vdwg.mxu0
    %2499 = vmatpush.bf16.msra.mxu0 %v1889
    %2500 = vmatpush.bf16.msra.mxu0 %v1888
    %2501 = vmatpush.bf16.msra.mxu0 %v1887
    %2502 = vmatpush.bf16.msra.mxu0 %v1886
    %2503 = vmatpush.bf16.msra.mxu0 %v1885
    %2504 = vmatpush.bf16.msra.mxu0 %v1884
    %2505 = vmatpush.bf16.msra.mxu0 %v1883
    %2506 = vmatpush.bf16.msra.mxu0 %v1882
    %2507 = vmatmul.bf16.gmra.mxu0 %v166
    %v2508 = vpop.f32.mrf.mxu0
    %v2509 = vadd.f32 %v2496, %v2508
    %v2510 = vpop.f32.mrf.mxu0
    %2511 = vdwg.mxu0
    %2512 = vmatpush.bf16.msra.mxu0 %v1897
    %2513 = vmatpush.bf16.msra.mxu0 %v1896
    %2514 = vmatpush.bf16.msra.mxu0 %v1895
    %2515 = vmatpush.bf16.msra.mxu0 %v1894
    %2516 = vmatpush.bf16.msra.mxu0 %v1893
    %2517 = vmatpush.bf16.msra.mxu0 %v1892
    %2518 = vmatpush.bf16.msra.mxu0 %v1891
    %2519 = vmatpush.bf16.msra.mxu0 %v1890
    %2520 = vmatmul.bf16.gmra.mxu0 %v167
    %v2521 = vpop.f32.mrf.mxu0
    %v2522 = vadd.f32 %v2509, %v2521
    %v2523 = vpop.f32.mrf.mxu0
    %2524 = vdwg.mxu0
    %2525 = vmatpush.bf16.msra.mxu0 %v1905
    %2526 = vmatpush.bf16.msra.mxu0 %v1904
    %2527 = vmatpush.bf16.msra.mxu0 %v1903
    %2528 = vmatpush.bf16.msra.mxu0 %v1902
    %2529 = vmatpush.bf16.msra.mxu0 %v1901
    %2530 = vmatpush.bf16.msra.mxu0 %v1900
    %2531 = vmatpush.bf16.msra.mxu0 %v1899
    %2532 = vmatpush.bf16.msra.mxu0 %v1898
    %2533 = vmatmul.bf16.gmra.mxu0 %v168
    %v2534 = vpop.f32.mrf.mxu0
    %v2535 = vadd.f32 %v2522, %v2534
    %v2536 = vpop.f32.mrf.mxu0
    %2537 = vdwg.mxu0
    %2538 = vmatpush.bf16.msra.mxu0 %v1913
    %2539 = vmatpush.bf16.msra.mxu0 %v1912
    %2540 = vmatpush.bf16.msra.mxu0 %v1911
    %2541 = vmatpush.bf16.msra.mxu0 %v1910
    %2542 = vmatpush.bf16.msra.mxu0 %v1909
    %2543 = vmatpush.bf16.msra.mxu0 %v1908
    %2544 = vmatpush.bf16.msra.mxu0 %v1907
    %2545 = vmatpush.bf16.msra.mxu0 %v1906
    %2546 = vmatmul.bf16.gmra.mxu0 %v169
    %v2547 = vpop.f32.mrf.mxu0
    %v2548 = vadd.f32 %v2535, %v2547
    %v2549 = vpop.f32.mrf.mxu0
    %2550 = vdwg.mxu0
    %2551 = vmatpush.bf16.msra.mxu0 %v1921
    %2552 = vmatpush.bf16.msra.mxu0 %v1920
    %2553 = vmatpush.bf16.msra.mxu0 %v1919
    %2554 = vmatpush.bf16.msra.mxu0 %v1918
    %2555 = vmatpush.bf16.msra.mxu0 %v1917
    %2556 = vmatpush.bf16.msra.mxu0 %v1916
    %2557 = vmatpush.bf16.msra.mxu0 %v1915
    %2558 = vmatpush.bf16.msra.mxu0 %v1914
    %2559 = vmatmul.bf16.gmra.mxu0 %v170
    %v2560 = vpop.f32.mrf.mxu0
    %v2561 = vadd.f32 %v2548, %v2560
    %v2562 = vpop.f32.mrf.mxu0
    %2563 = vdwg.mxu0
    %2564 = vmatpush.bf16.msra.mxu0 %v1929
    %2565 = vmatpush.bf16.msra.mxu0 %v1928
    %2566 = vmatpush.bf16.msra.mxu0 %v1927
    %2567 = vmatpush.bf16.msra.mxu0 %v1926
    %2568 = vmatpush.bf16.msra.mxu0 %v1925
    %2569 = vmatpush.bf16.msra.mxu0 %v1924
    %2570 = vmatpush.bf16.msra.mxu0 %v1923
    %2571 = vmatpush.bf16.msra.mxu0 %v1922
    %2572 = vmatmul.bf16.gmra.mxu0 %v171
    %v2573 = vpop.f32.mrf.mxu0
    %v2574 = vadd.f32 %v2561, %v2573
    %v2575 = vpop.f32.mrf.mxu0
    %2576 = vdwg.mxu0
    %2577 = vmatpush.bf16.msra.mxu0 %v1937
    %2578 = vmatpush.bf16.msra.mxu0 %v1936
    %2579 = vmatpush.bf16.msra.mxu0 %v1935
    %2580 = vmatpush.bf16.msra.mxu0 %v1934
    %2581 = vmatpush.bf16.msra.mxu0 %v1933
    %2582 = vmatpush.bf16.msra.mxu0 %v1932
    %2583 = vmatpush.bf16.msra.mxu0 %v1931
    %2584 = vmatpush.bf16.msra.mxu0 %v1930
    %2585 = vmatmul.bf16.gmra.mxu0 %v172
    %v2586 = vpop.f32.mrf.mxu0
    %v2587 = vadd.f32 %v2574, %v2586
    %v2588 = vpop.f32.mrf.mxu0
    %2589 = vdwg.mxu0
    %2590 = vmatpush.bf16.msra.mxu0 %v1945
    %2591 = vmatpush.bf16.msra.mxu0 %v1944
    %2592 = vmatpush.bf16.msra.mxu0 %v1943
    %2593 = vmatpush.bf16.msra.mxu0 %v1942
    %2594 = vmatpush.bf16.msra.mxu0 %v1941
    %2595 = vmatpush.bf16.msra.mxu0 %v1940
    %2596 = vmatpush.bf16.msra.mxu0 %v1939
    %2597 = vmatpush.bf16.msra.mxu0 %v1938
    %2598 = vmatmul.bf16.gmra.mxu0 %v173
    %v2599 = vpop.f32.mrf.mxu0
    %v2600 = vadd.f32 %v2587, %v2599
    %v2601 = vpop.f32.mrf.mxu0
    %2602 = vdwg.mxu0
    %2603 = vmatpush.bf16.msra.mxu0 %v1953
    %2604 = vmatpush.bf16.msra.mxu0 %v1952
    %2605 = vmatpush.bf16.msra.mxu0 %v1951
    %2606 = vmatpush.bf16.msra.mxu0 %v1950
    %2607 = vmatpush.bf16.msra.mxu0 %v1949
    %2608 = vmatpush.bf16.msra.mxu0 %v1948
    %2609 = vmatpush.bf16.msra.mxu0 %v1947
    %2610 = vmatpush.bf16.msra.mxu0 %v1946
    %2611 = vmatmul.bf16.gmra.mxu0 %v174
    %v2612 = vpop.f32.mrf.mxu0
    %v2613 = vadd.f32 %v2600, %v2612
    %v2614 = vpop.f32.mrf.mxu0
    %2615 = vdwg.mxu0
    %2616 = vmatpush.bf16.msra.mxu0 %v1961
    %2617 = vmatpush.bf16.msra.mxu0 %v1960
    %2618 = vmatpush.bf16.msra.mxu0 %v1959
    %2619 = vmatpush.bf16.msra.mxu0 %v1958
    %2620 = vmatpush.bf16.msra.mxu0 %v1957
    %2621 = vmatpush.bf16.msra.mxu0 %v1956
    %2622 = vmatpush.bf16.msra.mxu0 %v1955
    %2623 = vmatpush.bf16.msra.mxu0 %v1954
    %2624 = vmatmul.bf16.gmra.mxu0 %v175
    %v2625 = vpop.f32.mrf.mxu0
    %v2626 = vadd.f32 %v2613, %v2625
    %v2627 = vpop.f32.mrf.mxu0
    %2628 = vdwg.mxu0
    %2629 = vmatpush.bf16.msra.mxu0 %v1969
    %2630 = vmatpush.bf16.msra.mxu0 %v1968
    %2631 = vmatpush.bf16.msra.mxu0 %v1967
    %2632 = vmatpush.bf16.msra.mxu0 %v1966
    %2633 = vmatpush.bf16.msra.mxu0 %v1965
    %2634 = vmatpush.bf16.msra.mxu0 %v1964
    %2635 = vmatpush.bf16.msra.mxu0 %v1963
    %2636 = vmatpush.bf16.msra.mxu0 %v1962
    %2637 = vmatmul.bf16.gmra.mxu0 %v176
    %v2638 = vpop.f32.mrf.mxu0
    %v2639 = vadd.f32 %v2626, %v2638
    %v2640 = vpop.f32.mrf.mxu0
    %2641 = vdwg.mxu0
    %v2642 = vmax.f32 %v2639, 0.0
    %v2643 = vpack.c.bf16 %v2642, %v2642
    %v2644 = vld [vmem:[#allocation4] sm:$0xff]
    %v2645 = vld [vmem:[#allocation4 + $0x8] sm:$0xff]
    %v2646 = vld [vmem:[#allocation4 + $0x10] sm:$0xff]
    %v2647 = vld [vmem:[#allocation4 + $0x18] sm:$0xff]
    %v2648 = vld [vmem:[#allocation4 + $0x20] sm:$0xff]
    %v2649 = vld [vmem:[#allocation4 + $0x28] sm:$0xff]
    %v2650 = vld [vmem:[#allocation4 + $0x30] sm:$0xff]
    %v2651 = vld [vmem:[#allocation4 + $0x38] sm:$0xff]
    %v2652 = vld [vmem:[#allocation4 + $0x40] sm:$0xff]
    %v2653 = vld [vmem:[#allocation4 + $0x48] sm:$0xff]
    %v2654 = vld [vmem:[#allocation4 + $0x50] sm:$0xff]
    %v2655 = vld [vmem:[#allocation4 + $0x58] sm:$0xff]
    %v2656 = vld [vmem:[#allocation4 + $0x60] sm:$0xff]
    %v2657 = vld [vmem:[#allocation4 + $0x68] sm:$0xff]
    %v2658 = vld [vmem:[#allocation4 + $0x70] sm:$0xff]
    %v2659 = vld [vmem:[#allocation4 + $0x78] sm:$0xff]
    %v2660 = vld [vmem:[%s4] sm:$0x3]
    %v2677 = vunpack.c.l.b16 %v2644
    %v2678 = vunpack.c.h.b16 %v2644
    %v2679 = vunpack.c.l.b16 %v2645
    %v2680 = vunpack.c.h.b16 %v2645
    %v2681 = vunpack.c.l.b16 %v2646
    %v2682 = vunpack.c.h.b16 %v2646
    %v2683 = vunpack.c.l.b16 %v2647
    %v2684 = vunpack.c.h.b16 %v2647
    %v2685 = vunpack.c.l.b16 %v2648
    %v2686 = vunpack.c.h.b16 %v2648
    %v2687 = vunpack.c.l.b16 %v2649
    %v2688 = vunpack.c.h.b16 %v2649
    %v2689 = vunpack.c.l.b16 %v2650
    %v2690 = vunpack.c.h.b16 %v2650
    %v2691 = vunpack.c.l.b16 %v2651
    %v2692 = vunpack.c.h.b16 %v2651
    %v2693 = vunpack.c.l.b16 %v2652
    %v2694 = vunpack.c.h.b16 %v2652
    %v2695 = vunpack.c.l.b16 %v2653
    %v2696 = vunpack.c.h.b16 %v2653
    %v2697 = vunpack.c.l.b16 %v2654
    %v2698 = vunpack.c.h.b16 %v2654
    %v2699 = vunpack.c.l.b16 %v2655
    %v2700 = vunpack.c.h.b16 %v2655
    %v2701 = vunpack.c.l.b16 %v2656
    %v2702 = vunpack.c.h.b16 %v2656
    %v2703 = vunpack.c.l.b16 %v2657
    %v2704 = vunpack.c.h.b16 %v2657
    %v2705 = vunpack.c.l.b16 %v2658
    %v2706 = vunpack.c.h.b16 %v2658
    %v2707 = vunpack.c.l.b16 %v2659
    %v2708 = vunpack.c.h.b16 %v2659
    %v2709 = vpack.c.b16 %v2679, %v2677
    %v2710 = vpack.c.b16 %v2680, %v2678
    %v2711 = vpack.c.b16 %v2683, %v2681
    %v2712 = vpack.c.b16 %v2684, %v2682
    %v2713 = vpack.c.b16 %v2687, %v2685
    %v2714 = vpack.c.b16 %v2688, %v2686
    %v2715 = vpack.c.b16 %v2691, %v2689
    %v2716 = vpack.c.b16 %v2692, %v2690
    %v2717 = vpack.c.b16 %v2695, %v2693
    %v2718 = vpack.c.b16 %v2696, %v2694
    %v2719 = vpack.c.b16 %v2699, %v2697
    %v2720 = vpack.c.b16 %v2700, %v2698
    %v2721 = vpack.c.b16 %v2703, %v2701
    %v2722 = vpack.c.b16 %v2704, %v2702
    %v2723 = vpack.c.b16 %v2707, %v2705
    %v2724 = vpack.c.b16 %v2708, %v2706
    %v2742 = vperm.slane %v2660, 0
    %v2743 = vperm.slane %v2660, 1
    %2746 = vmatpush.bf16.msra.mxu0 %v2723
    %2747 = vmatpush.bf16.msra.mxu0 %v2721
    %2748 = vmatpush.bf16.msra.mxu0 %v2719
    %2749 = vmatpush.bf16.msra.mxu0 %v2717
    %2750 = vmatpush.bf16.msra.mxu0 %v2715
    %2751 = vmatpush.bf16.msra.mxu0 %v2713
    %2752 = vmatpush.bf16.msra.mxu0 %v2711
    %2753 = vmatpush.bf16.msra.mxu0 %v2709
    %2754 = vmatmul.bf16.gmra.mxu0 %v2643
    %v2755 = vpop.f32.mrf.mxu0
    %v2756 = vadd.f32 %v2742, %v2755
    %v2757 = vpop.f32.mrf.mxu0
    %2758 = vdwg.mxu0
    %2759 = vmatpush.bf16.msra.mxu0 %v2724
    %2760 = vmatpush.bf16.msra.mxu0 %v2722
    %2761 = vmatpush.bf16.msra.mxu0 %v2720
    %2762 = vmatpush.bf16.msra.mxu0 %v2718
    %2763 = vmatpush.bf16.msra.mxu0 %v2716
    %2764 = vmatpush.bf16.msra.mxu0 %v2714
    %2765 = vmatpush.bf16.msra.mxu0 %v2712
    %2766 = vmatpush.bf16.msra.mxu0 %v2710
    %2767 = vmatmul.bf16.gmra.mxu0 %v2643
    %v2768 = vpop.f32.mrf.mxu0
    %v2769 = vadd.f32 %v2743, %v2768
    %v2770 = vpop.f32.mrf.mxu0
    %2771 = vdwg.mxu0
    %v2772 = vmax.f32 %v2756, 0.0
    %v2773 = vmax.f32 %v2769, 0.0
    %v2774 = vpack.c.bf16 %v2772, %v2772
    %v2775 = vpack.c.bf16 %v2773, %v2773
    %v2776 = vld [vmem:[#allocation6] sm:$0xf]
    %v2777 = vld [vmem:[#allocation6 + $0x4] sm:$0xf]
    %v2778 = vld [vmem:[#allocation6 + $0x8] sm:$0xf]
    %v2779 = vld [vmem:[#allocation6 + $0xc] sm:$0xf]
    %v2780 = vld [vmem:[#allocation6 + $0x10] sm:$0xf]
    %v2781 = vld [vmem:[#allocation6 + $0x14] sm:$0xf]
    %v2782 = vld [vmem:[#allocation6 + $0x18] sm:$0xf]
    %v2783 = vld [vmem:[#allocation6 + $0x1c] sm:$0xf]
    %v2784 = vld [vmem:[#allocation6 + $0x20] sm:$0xf]
    %v2785 = vld [vmem:[#allocation6 + $0x24] sm:$0xf]
    %v2786 = vld [vmem:[#allocation6 + $0x28] sm:$0xf]
    %v2787 = vld [vmem:[#allocation6 + $0x2c] sm:$0xf]
    %v2788 = vld [vmem:[#allocation6 + $0x30] sm:$0xf]
    %v2789 = vld [vmem:[#allocation6 + $0x34] sm:$0xf]
    %v2790 = vld [vmem:[#allocation6 + $0x38] sm:$0xf]
    %v2791 = vld [vmem:[#allocation6 + $0x3c] sm:$0xf]
    %v2792 = vld [vmem:[#allocation6 + $0x40] sm:$0xf]
    %v2793 = vld [vmem:[#allocation6 + $0x44] sm:$0xf]
    %v2794 = vld [vmem:[#allocation6 + $0x48] sm:$0xf]
    %v2795 = vld [vmem:[#allocation6 + $0x4c] sm:$0xf]
    %v2796 = vld [vmem:[#allocation6 + $0x50] sm:$0xf]
    %v2797 = vld [vmem:[#allocation6 + $0x54] sm:$0xf]
    %v2798 = vld [vmem:[#allocation6 + $0x58] sm:$0xf]
    %v2799 = vld [vmem:[#allocation6 + $0x5c] sm:$0xf]
    %v2800 = vld [vmem:[#allocation6 + $0x60] sm:$0xf]
    %v2801 = vld [vmem:[#allocation6 + $0x64] sm:$0xf]
    %v2802 = vld [vmem:[#allocation6 + $0x68] sm:$0xf]
    %v2803 = vld [vmem:[#allocation6 + $0x6c] sm:$0xf]
    %v2804 = vld [vmem:[#allocation6 + $0x70] sm:$0xf]
    %v2805 = vld [vmem:[#allocation6 + $0x74] sm:$0xf]
    %v2806 = vld [vmem:[#allocation6 + $0x78] sm:$0xf]
    %v2807 = vld [vmem:[#allocation6 + $0x7c] sm:$0xf]
    %v2808 = vld [vmem:[%s6] sm:$0x1]
    %v2841 = vunpack.c.l.b16 %v2776
    %v2842 = vunpack.c.l.b16 %v2777
    %v2843 = vunpack.c.l.b16 %v2778
    %v2844 = vunpack.c.l.b16 %v2779
    %v2845 = vunpack.c.l.b16 %v2780
    %v2846 = vunpack.c.l.b16 %v2781
    %v2847 = vunpack.c.l.b16 %v2782
    %v2848 = vunpack.c.l.b16 %v2783
    %v2849 = vunpack.c.l.b16 %v2784
    %v2850 = vunpack.c.l.b16 %v2785
    %v2851 = vunpack.c.l.b16 %v2786
    %v2852 = vunpack.c.l.b16 %v2787
    %v2853 = vunpack.c.l.b16 %v2788
    %v2854 = vunpack.c.l.b16 %v2789
    %v2855 = vunpack.c.l.b16 %v2790
    %v2856 = vunpack.c.l.b16 %v2791
    %v2857 = vunpack.c.l.b16 %v2792
    %v2858 = vunpack.c.l.b16 %v2793
    %v2859 = vunpack.c.l.b16 %v2794
    %v2860 = vunpack.c.l.b16 %v2795
    %v2861 = vunpack.c.l.b16 %v2796
    %v2862 = vunpack.c.l.b16 %v2797
    %v2863 = vunpack.c.l.b16 %v2798
    %v2864 = vunpack.c.l.b16 %v2799
    %v2865 = vunpack.c.l.b16 %v2800
    %v2866 = vunpack.c.l.b16 %v2801
    %v2867 = vunpack.c.l.b16 %v2802
    %v2868 = vunpack.c.l.b16 %v2803
    %v2869 = vunpack.c.l.b16 %v2804
    %v2870 = vunpack.c.l.b16 %v2805
    %v2871 = vunpack.c.l.b16 %v2806
    %v2872 = vunpack.c.l.b16 %v2807
    %v2873 = vpack.c.b16 %v2842, %v2841
    %v2874 = vpack.c.b16 %v2844, %v2843
    %v2875 = vpack.c.b16 %v2846, %v2845
    %v2876 = vpack.c.b16 %v2848, %v2847
    %v2877 = vpack.c.b16 %v2850, %v2849
    %v2878 = vpack.c.b16 %v2852, %v2851
    %v2879 = vpack.c.b16 %v2854, %v2853
    %v2880 = vpack.c.b16 %v2856, %v2855
    %v2881 = vpack.c.b16 %v2858, %v2857
    %v2882 = vpack.c.b16 %v2860, %v2859
    %v2883 = vpack.c.b16 %v2862, %v2861
    %v2884 = vpack.c.b16 %v2864, %v2863
    %v2885 = vpack.c.b16 %v2866, %v2865
    %v2886 = vpack.c.b16 %v2868, %v2867
    %v2887 = vpack.c.b16 %v2870, %v2869
    %v2888 = vpack.c.b16 %v2872, %v2871
    %2905 = vmatpush.bf16.msra.mxu0 %v2880
    %2906 = vmatpush.bf16.msra.mxu0 %v2879
    %2907 = vmatpush.bf16.msra.mxu0 %v2878
    %2908 = vmatpush.bf16.msra.mxu0 %v2877
    %2909 = vmatpush.bf16.msra.mxu0 %v2876
    %2910 = vmatpush.bf16.msra.mxu0 %v2875
    %2911 = vmatpush.bf16.msra.mxu0 %v2874
    %2912 = vmatpush.bf16.msra.mxu0 %v2873
    %2913 = vmatmul.bf16.gmra.mxu0 %v2774
    %v2914 = vpop.f32.mrf.mxu0
    %v2915 = vadd.f32 %v2808, %v2914
    %v2916 = vpop.f32.mrf.mxu0
    %2917 = vdwg.mxu0
    %2918 = vmatpush.bf16.msra.mxu0 %v2888
    %2919 = vmatpush.bf16.msra.mxu0 %v2887
    %2920 = vmatpush.bf16.msra.mxu0 %v2886
    %2921 = vmatpush.bf16.msra.mxu0 %v2885
    %2922 = vmatpush.bf16.msra.mxu0 %v2884
    %2923 = vmatpush.bf16.msra.mxu0 %v2883
    %2924 = vmatpush.bf16.msra.mxu0 %v2882
    %2925 = vmatpush.bf16.msra.mxu0 %v2881
    %2926 = vmatmul.bf16.gmra.mxu0 %v2775
    %v2927 = vpop.f32.mrf.mxu0
    %v2928 = vadd.f32 %v2915, %v2927
    %v2929 = vpop.f32.mrf.mxu0
    %2930 = vdwg.mxu0
    %2931 = vst [vmem:[%s7] sm:$0x1] %v2928
    // Predicated region
    $region42: #{actor_forward.1} parent=1 // pred_check
      _
    $region43: #{actor_forward.1} parent=1 // pred_check_branch
      %2933 = sbr.rel (0) target = $region45
    $region44: #{actor_forward.1} parent=1 // pred_region
      _
    $region45: #{actor_forward.1} parent=1 // pred_fallthru
      _
    // Predicated region
    $region46: #{actor_forward.1} parent=1 // pred_check
      _
    $region47: #{actor_forward.1} parent=1 // pred_check_branch
      %2935 = sbr.rel (0) target = $region49
    $region48: #{actor_forward.1} parent=1 // pred_region
      _
    $region49: #{actor_forward.1} parent=1 // pred_fallthru
      _
    %2936 = vsyncpa [#allocation3], 1
    %2937 = vsyncpa [#allocation5], 1

</llo_original>
